<compile_context>
chip_gen: v7x
topology: tpu7x:2x2x1
jax: 0.10.0
libtpu: 0.0.40
codegen_flags: <defaults>
</compile_context>

<pallas_src>
import math
import functools

import jax
import jax.numpy as jnp
from jax.experimental import pallas as pl
from jax.experimental.pallas import tpu as pltpu

# ----------------------------- configuration --------------------------------
B = 2              # batch
T = 8              # num_tokens
D_IN = 32          # d_in
D_OUT = 32         # d_out
NUM_HEADS = 4
HEAD_DIM = D_OUT // NUM_HEADS
CONTEXT_LENGTH = 16
ROPE_BASE = 10000.0


# ------------------------------- kernel -------------------------------------
def _mha_rope_kernel(x_ref, w_ref, trig_ref, bias_ref, wo_h_ref, bo_ref,
                     o_ref, *, num_heads, head_dim, d_out):
    """One invocation: whole (B*T) token slab, all heads, all batches."""
    bt = x_ref.shape[0]

    x = x_ref[...]                                        # (BT, D_IN)

    # One fused projection: [Wq*s | Wk | Wq*s@R | Wk@R | Wv].
    proj = jnp.dot(x, w_ref[...],
                   preferred_element_type=jnp.float32)    # (BT, 5*D_OUT)
    qk = proj[:, :2 * d_out]                              # [q | k], score scale folded
    qkr = proj[:, 2 * d_out:4 * d_out]                    # [(q@R) | (k@R)]
    v = proj[:, 4 * d_out:]                               # (BT, D_OUT)

    # RoPE on q and k together: ONE elementwise FMA over the contiguous block.
    qk = qk * trig_ref[0] + qkr * trig_ref[1]             # (BT, 2*D_OUT)

    # Head-major relayout (one reshape+transpose per tensor, no slice+stack).
    qk3 = jnp.transpose(qk.reshape(bt, 2 * num_heads, head_dim),
                        (1, 0, 2))                        # (2H, BT, hd)
    q3 = qk3[:num_heads]                                  # (H, BT, hd)
    k3 = qk3[num_heads:]                                  # (H, BT, hd)
    v3 = jnp.transpose(v.reshape(bt, num_heads, head_dim),
                       (1, 0, 2))                         # (H, BT, hd)

    # Scores for all heads / all batch rows (block-diag structure handled by
    # the precomputed additive bias; scale already folded into Wq).
    s = jnp.einsum('hqd,hkd->hqk', q3, k3,
                   preferred_element_type=jnp.float32)    # (H, BT, BT)
    s = s + bias_ref[...][None, :, :]                     # 0 / -1e30 additive mask

    # Row-stable softmax; divide goes to the EUP via approx reciprocal.
    m = jnp.max(s, axis=-1, keepdims=True)
    p = jnp.exp(s - m)
    l = jnp.sum(p, axis=-1, keepdims=True)
    p = p * pl.reciprocal(l, approx=True)

    ctx3 = jnp.einsum('hqk,hkd->hqd', p, v3,
                      preferred_element_type=jnp.float32)  # (H, BT, hd)

    # Per-head output projection on the MXU, summed over the (tiny) head axis.
    outh = jnp.einsum('hqd,hdo->hqo', ctx3, wo_h_ref[...],
                      preferred_element_type=jnp.float32)  # (H, BT, D_OUT)
    o_ref[...] = jnp.sum(outh, axis=0) + bo_ref[...]


# ------------------------------- wrapper -------------------------------------
def mha_rope_pallas(x, attn_mask, positions, params):
    """x: (B,T,D_IN) f32; attn_mask: (B,T,T) bool; positions: (T,) int32."""
    b, t, d_in = x.shape
    wq, wk, wv, wo, bo = (params["wq"], params["wk"], params["wv"],
                          params["wo"], params["bo"])
    d_out = wq.shape[1]
    h = NUM_HEADS
    hd = d_out // h
    scale = 1.0 / math.sqrt(hd)

    # --- RoPE tables (glue; trig on tiny arrays), packed for the fused q|k FMA.
    inv_freq = 1.0 / (ROPE_BASE ** (jnp.arange(0, hd, 2,
                                               dtype=jnp.float32) / hd))
    ang = positions.astype(jnp.float32)[:, None] * inv_freq[None, :]      # (T, hd/2)
    cos = jnp.repeat(jnp.cos(ang), 2, axis=-1)                            # (T, hd)
    sin = jnp.repeat(jnp.sin(ang), 2, axis=-1)
    cos_qk = jnp.tile(jnp.tile(cos, (1, 2 * h)), (b, 1))                  # (BT, 2*D_OUT)
    sin_qk = jnp.tile(jnp.tile(sin, (1, 2 * h)), (b, 1))
    trig = jnp.stack([cos_qk, sin_qk], axis=0)                            # (2, BT, 2*D_OUT)

    # Signed pair-swap matrix:  (x @ R)[2i] = -x[2i+1], (x @ R)[2i+1] = x[2i]
    r = jnp.zeros((hd, hd), jnp.float32)
    idx = jnp.arange(0, hd, 2)
    r = r.at[idx + 1, idx].set(-1.0)
    r = r.at[idx, idx + 1].set(1.0)
    rot = jnp.kron(jnp.eye(h, dtype=jnp.float32), r)                      # (D_OUT, D_OUT)

    # Parameter prep (once, outside the hot path): fold the score scale into
    # Wq and the RoPE rotation into extra weight columns, q|k contiguous.
    wq_s = wq * scale
    w_fused = jnp.concatenate([wq_s, wk, wq_s @ rot, wk @ rot, wv],
                              axis=1)                                     # (D_IN, 5*D_OUT)

    # Combined additive mask bias: same-batch AND causal AND user, (BT, BT).
    causal = jnp.tril(jnp.ones((t, t), dtype=bool))
    allow_b = jnp.logical_and(attn_mask, causal[None])                    # (B, T, T)
    eye_b = jnp.eye(b, dtype=bool)
    allow_full = jnp.logical_and(eye_b[:, None, :, None],
                                 allow_b[:, :, None, :])                  # (B, T, B, T)
    mask_bias = jnp.where(allow_full.reshape(b * t, b * t),
                          0.0, -1e30).astype(jnp.float32)                 # (BT, BT)

    x2 = x.reshape(b * t, d_in)
    wo_h = wo.reshape(h, hd, d_out)                                       # per-head out proj
    bo2 = bo.reshape(1, d_out)

    kernel = functools.partial(_mha_rope_kernel, num_heads=h,
                               head_dim=hd, d_out=d_out)

    vmem = pl.BlockSpec(memory_space=pltpu.MemorySpace.VMEM)

    out2 = pl.pallas_call(
        kernel,
        out_shape=jax.ShapeDtypeStruct((b * t, d_out), jnp.float32),
        in_specs=[vmem] * 6,
        out_specs=vmem,
    )(x2, w_fused, trig, mask_bias, wo_h, bo2)

    return out2.reshape(b, t, d_out)


# --------------------------- pure-JAX reference ------------------------------
def mha_rope_reference(x, attn_mask, positions, params):
    b, t, _ = x.shape
    wq, wk, wv, wo, bo = (params["wq"], params["wk"], params["wv"],
                          params["wo"], params["bo"])
    h, hd = NUM_HEADS, HEAD_DIM

    q = (x @ wq).reshape(b, t, h, hd)
    k = (x @ wk).reshape(b, t, h, hd)
    v = (x @ wv).reshape(b, t, h, hd)

    inv_freq = 1.0 / (ROPE_BASE ** (jnp.arange(0, hd, 2, dtype=jnp.float32) / hd))
    ang = positions.astype(jnp.float32)[:, None] * inv_freq[None, :]
    c = jnp.cos(ang)[None, :, None, :]
    s = jnp.sin(ang)[None, :, None, :]

    def rope(tns):
        t2 = tns.reshape(b, t, h, hd // 2, 2)
        o0 = t2[..., 0] * c - t2[..., 1] * s
        o1 = t2[..., 1] * c + t2[..., 0] * s
        return jnp.stack([o0, o1], axis=-1).reshape(b, t, h, hd)

    q, k = rope(q), rope(k)
    q = q.transpose(0, 2, 1, 3)
    k = k.transpose(0, 2, 1, 3)
    v = v.transpose(0, 2, 1, 3)

    causal = jnp.tril(jnp.ones((t, t), bool))
    mask = jnp.logical_and(attn_mask[:, None, :, :], causal[None, None])

    scores = jnp.einsum("bhqd,bhkd->bhqk", q, k) / math.sqrt(hd)
    scores = jnp.where(mask, scores, -1e30)
    p = jax.nn.softmax(scores, axis=-1)
    ctx = jnp.einsum("bhqk,bhkd->bhqd", p, v)
    ctx = ctx.transpose(0, 2, 1, 3).reshape(b, t, D_OUT)
    return ctx @ wo + bo


# --------------------------------- main --------------------------------------
if __name__ == "__main__":
    key = jax.random.PRNGKey(0)
    kx, kq, kk, kv, ko, kb = jax.random.split(key, 6)

    x = jax.random.normal(kx, (B, T, D_IN), jnp.float32)

    # Deterministic parameter init (shapes from nn.Linear, stored as (in, out)).
    params = {
        "wq": 0.05 * jax.random.normal(kq, (D_IN, D_OUT), jnp.float32),
        "wk": 0.05 * jax.random.normal(kk, (D_IN, D_OUT), jnp.float32),
        "wv": 0.05 * jax.random.normal(kv, (D_IN, D_OUT), jnp.float32),
        "wo": 0.05 * jax.random.normal(ko, (D_OUT, D_OUT), jnp.float32),
        "bo": 0.01 * jax.random.normal(kb, (D_OUT,), jnp.float32),
    }

    # Key-padding style user mask (batch 0 sees all 8 tokens, batch 1 sees 6).
    lengths = jnp.array([T, T - 2])
    col = jnp.arange(T)
    attn_mask = (col[None, None, :] < lengths[:, None, None])        # (B, T, T)
    attn_mask = jnp.broadcast_to(attn_mask, (B, T, T))

    positions = jnp.arange(T, dtype=jnp.int32)

    out = mha_rope_pallas(x, attn_mask, positions, params)
    out = jax.block_until_ready(out)

    ref = mha_rope_reference(x, attn_mask, positions, params)
    assert out.shape == (B, T, D_OUT)
    assert jnp.allclose(out, ref, rtol=2e-3, atol=2e-3), "mismatch vs reference"

    print("KERNEL_OK")
</pallas_src>

<mosaic_0001>
module attributes {stable_mosaic.version = 11 : i64} {
  func.func @_mha_rope_kernel(%arg0: memref<16x32xf32, #tpu.memory_space<vmem>>, %arg1: memref<32x160xf32, #tpu.memory_space<vmem>>, %arg2: memref<2x16x64xf32, #tpu.memory_space<vmem>>, %arg3: memref<16x16xf32, #tpu.memory_space<vmem>>, %arg4: memref<4x8x32xf32, #tpu.memory_space<vmem>>, %arg5: memref<1x32xf32, #tpu.memory_space<vmem>>, %arg6: memref<16x32xf32, #tpu.memory_space<vmem>>) attributes {dimension_semantics = [], scalar_prefetch = 0 : i64, scratch_operands = 0 : i64, tpu.core_type = #tpu.core_type<tc>} {
    %c0 = arith.constant 0 : index
    %c0_0 = arith.constant 0 : index
    %0 = vector.load %arg0[%c0, %c0_0] : memref<16x32xf32, #tpu.memory_space<vmem>>, vector<16x32xf32>
    %c0_1 = arith.constant 0 : index
    %c0_2 = arith.constant 0 : index
    %1 = vector.load %arg1[%c0_1, %c0_2] : memref<32x160xf32, #tpu.memory_space<vmem>>, vector<32x160xf32>
    %cst = arith.constant dense<0.000000e+00> : vector<16x160xf32>
    %2 = tpu.matmul %0, %1, %cst {dimension_numbers = #tpu.dot_dimension_numbers<[1], [0], [0], [1], [0, 0, 1, 1], [], []>} : vector<16x32xf32>, vector<32x160xf32>, vector<16x160xf32> -> vector<16x160xf32>
    %3 = vector.extract_strided_slice %2 {offsets = [0, 0], sizes = [16, 64], strides = [1, 1]} : vector<16x160xf32> to vector<16x64xf32>
    %4 = vector.extract_strided_slice %2 {offsets = [0, 64], sizes = [16, 64], strides = [1, 1]} : vector<16x160xf32> to vector<16x64xf32>
    %5 = vector.extract_strided_slice %2 {offsets = [0, 128], sizes = [16, 32], strides = [1, 1]} : vector<16x160xf32> to vector<16x32xf32>
    %c0_3 = arith.constant 0 : index
    %c0_4 = arith.constant 0 : index
    %c0_5 = arith.constant 0 : index
    %6 = vector.load %arg2[%c0_3, %c0_4, %c0_5] : memref<2x16x64xf32, #tpu.memory_space<vmem>>, vector<1x16x64xf32>
    %7 = vector.shape_cast %6 : vector<1x16x64xf32> to vector<16x64xf32>
    %8 = arith.mulf %3, %7 : vector<16x64xf32>
    %c1 = arith.constant 1 : index
    %c0_6 = arith.constant 0 : index
    %c0_7 = arith.constant 0 : index
    %9 = vector.load %arg2[%c1, %c0_6, %c0_7] : memref<2x16x64xf32, #tpu.memory_space<vmem>>, vector<1x16x64xf32>
    %10 = vector.shape_cast %9 : vector<1x16x64xf32> to vector<16x64xf32>
    %11 = arith.mulf %4, %10 : vector<16x64xf32>
    %12 = arith.addf %8, %11 : vector<16x64xf32>
    %13 = vector.shape_cast %12 : vector<16x64xf32> to vector<16x8x8xf32>
    %14 = tpu.transpose %13, [1, 0, 2] : vector<16x8x8xf32> -> vector<8x16x8xf32>
    %15 = vector.extract_strided_slice %14 {offsets = [0, 0, 0], sizes = [4, 16, 8], strides = [1, 1, 1]} : vector<8x16x8xf32> to vector<4x16x8xf32>
    %16 = vector.extract_strided_slice %14 {offsets = [4, 0, 0], sizes = [4, 16, 8], strides = [1, 1, 1]} : vector<8x16x8xf32> to vector<4x16x8xf32>
    %17 = vector.shape_cast %5 : vector<16x32xf32> to vector<16x4x8xf32>
    %18 = tpu.transpose %17, [1, 0, 2] : vector<16x4x8xf32> -> vector<4x16x8xf32>
    "tpu.trace_start"() <{level = 10 : i32, message = "hqd,hkd->hqk"}> : () -> ()
    %cst_8 = arith.constant dense<0.000000e+00> : vector<4x16x16xf32>
    %19 = tpu.matmul %15, %16, %cst_8 {dimension_numbers = #tpu.dot_dimension_numbers<[2], [2], [1], [1], [0, 0, 0, 1, 1, 1], [0], [0]>} : vector<4x16x8xf32>, vector<4x16x8xf32>, vector<4x16x16xf32> -> vector<4x16x16xf32>
    "tpu.trace_stop"() : () -> ()
    %c0_9 = arith.constant 0 : index
    %c0_10 = arith.constant 0 : index
    %20 = vector.load %arg3[%c0_9, %c0_10] : memref<16x16xf32, #tpu.memory_space<vmem>>, vector<16x16xf32>
    %21 = vector.shape_cast %20 : vector<16x16xf32> to vector<1x16x16xf32>
    %22 = vector.broadcast %21 : vector<1x16x16xf32> to vector<4x16x16xf32>
    %23 = arith.addf %19, %22 : vector<4x16x16xf32>
    %cst_11 = arith.constant dense<0xFF800000> : vector<4x16xf32>
    %24 = vector.multi_reduction <maximumf>, %23, %cst_11 [2] : vector<4x16x16xf32> to vector<4x16xf32>
    %25 = vector.shape_cast %24 : vector<4x16xf32> to vector<4x16x1xf32>
    %26 = vector.broadcast %25 : vector<4x16x1xf32> to vector<4x16x16xf32>
    %27 = arith.subf %23, %26 : vector<4x16x16xf32>
    %28 = math.exp %27 : vector<4x16x16xf32>
    %cst_12 = arith.constant dense<0.000000e+00> : vector<4x16xf32>
    %29 = vector.multi_reduction <add>, %28, %cst_12 [2] : vector<4x16x16xf32> to vector<4x16xf32>
    %30 = vector.shape_cast %29 : vector<4x16xf32> to vector<4x16x1xf32>
    %31 = tpu.reciprocal %30 {approx = true} : vector<4x16x1xf32> -> vector<4x16x1xf32>
    %32 = vector.broadcast %31 : vector<4x16x1xf32> to vector<4x16x16xf32>
    %33 = arith.mulf %28, %32 : vector<4x16x16xf32>
    "tpu.trace_start"() <{level = 10 : i32, message = "hqk,hkd->hqd"}> : () -> ()
    %cst_13 = arith.constant dense<0.000000e+00> : vector<4x16x8xf32>
    %34 = tpu.matmul %33, %18, %cst_13 {dimension_numbers = #tpu.dot_dimension_numbers<[2], [1], [1], [2], [0, 0, 0, 1, 1, 2], [0], [0]>} : vector<4x16x16xf32>, vector<4x16x8xf32>, vector<4x16x8xf32> -> vector<4x16x8xf32>
    "tpu.trace_stop"() : () -> ()
    %c0_14 = arith.constant 0 : index
    %c0_15 = arith.constant 0 : index
    %c0_16 = arith.constant 0 : index
    %35 = vector.load %arg4[%c0_14, %c0_15, %c0_16] : memref<4x8x32xf32, #tpu.memory_space<vmem>>, vector<4x8x32xf32>
    "tpu.trace_start"() <{level = 10 : i32, message = "hqd,hdo->hqo"}> : () -> ()
    %cst_17 = arith.constant dense<0.000000e+00> : vector<4x16x32xf32>
    %36 = tpu.matmul %34, %35, %cst_17 {dimension_numbers = #tpu.dot_dimension_numbers<[2], [1], [1], [2], [0, 0, 0, 1, 1, 2], [0], [0]>} : vector<4x16x8xf32>, vector<4x8x32xf32>, vector<4x16x32xf32> -> vector<4x16x32xf32>
    "tpu.trace_stop"() : () -> ()
    %cst_18 = arith.constant dense<0.000000e+00> : vector<16x32xf32>
    %37 = vector.multi_reduction <add>, %36, %cst_18 [0] : vector<4x16x32xf32> to vector<16x32xf32>
    %c0_19 = arith.constant 0 : index
    %c0_20 = arith.constant 0 : index
    %38 = vector.load %arg5[%c0_19, %c0_20] : memref<1x32xf32, #tpu.memory_space<vmem>>, vector<1x32xf32>
    %39 = vector.broadcast %38 : vector<1x32xf32> to vector<16x32xf32>
    %40 = arith.addf %37, %39 : vector<16x32xf32>
    %c0_21 = arith.constant 0 : index
    %c0_22 = arith.constant 0 : index
    %41 = vector.load %arg6[%c0_21, %c0_22] : memref<16x32xf32, #tpu.memory_space<vmem>>, vector<16x32xf32>
    tpu.vector_store %arg6[%c0_21, %c0_22], %40 {strides = array<i32>} : memref<16x32xf32, #tpu.memory_space<vmem>>, vector<16x32xf32>,
    return
  }
}

</mosaic_0001>

<llo_original>
// kernel: tpu_custom_call.1
$region0: #{tpu_custom_call.1}
  #allocation0 [shape = 'u32[]', space=smem, size = 0x4, offset = 0x4, fixed_abs, tag = 'smem constant byte address 0x4 - core index']
  #allocation1 [shape = 'u32[144,128]{1,0:T(1,128)}', space=vmem, size = 0x12000, scoped, tag = 'internal scratch']
  %s0 = inlined_call_operand.hbm [shape: f32[16,32], index: 0, kind: input, shape index: {}]
  %s1 = inlined_call_operand.hbm [shape: f32[32,160], index: 1, kind: input, shape index: {}]
  %s2 = inlined_call_operand.hbm [shape: f32[2,16,64], index: 2, kind: input, shape index: {}]
  %s3 = inlined_call_operand.hbm [shape: f32[16,16], index: 3, kind: input, shape index: {}]
  %s4 = inlined_call_operand.hbm [shape: f32[4,8,32], index: 4, kind: input, shape index: {}]
  %s5 = inlined_call_operand.vmem [shape: f32[1,32], index: 5, kind: input, shape index: {}]
  %s6 = inlined_call_operand.hbm [shape: f32[16,32], index: 6, kind: output, shape index: {}]
  %s7 = sld [smem:[#allocation0]]
  $region54: #{tpu_custom_call.1} parent=0
    _
  %s9 = ssub.s32 1, %s7
  %s10 = scalar_select 0, %s9, %s7
  $region1: #{tpu_custom_call.1} parent=0
    #allocation2 [shape = 'u8[8192]{0}', space=vmem, size = 0x2000, scoped, tag = 'input window, operand 0, single buffered']
    #allocation3 [shape = 's32[1]{0}', space=sflag, size = 0x4, scoped, tag = 'scoped memory for tpu_custom_call.1']
    #allocation4 [shape = 's32[1]{0}', space=sflag, size = 0x4, scoped, tag = 'scoped memory for tpu_custom_call.1']
    #allocation5 [shape = 'u8[32768]{0}', space=vmem, size = 0x8000, scoped, tag = 'input window, operand 1, single buffered']
    #allocation6 [shape = 's32[1]{0}', space=sflag, size = 0x4, scoped, tag = 'scoped memory for tpu_custom_call.1']
    #allocation7 [shape = 'u8[16384]{0}', space=vmem, size = 0x4000, scoped, tag = 'input window, operand 2, single buffered']
    #allocation8 [shape = 'u8[8192]{0}', space=vmem, size = 0x2000, scoped, tag = 'input window, operand 3, single buffered']
    #allocation9 [shape = 's32[1]{0}', space=sflag, size = 0x4, scoped, tag = 'scoped memory for tpu_custom_call.1']
    #allocation10 [shape = 'u8[16384]{0}', space=vmem, size = 0x4000, scoped, tag = 'input window, operand 4, single buffered']
    #allocation11 [shape = 'u8[8192]{0}', space=vmem, size = 0x2000, scoped, tag = 'output window, operand 0, single buffered']
    %11 = vsyncpa [#allocation3], 0
    %12 = vsyncpa [#allocation6], 0
    %13 = vsyncpa [#allocation9], 0
    %14 = vsyncpa [#allocation4], 0
    // Predicated region
    $region2: #{tpu_custom_call.1} parent=1 // pred_check
      _
    $region3: #{tpu_custom_call.1} parent=1 // pred_check_branch
      %16 = sbr.rel (0) target = $region5
    $region4: #{tpu_custom_call.1} parent=1 // pred_region
      %s18 = ssub.s32 256, 256
      %19 = vsyncadd [#allocation3], %s18
      %s20 = sshll.u32 [#allocation2], 4
      %s21 = int_to_ptr.vmem [resolvable:$true] %s20
      %26 = dma.hbm_to_vmem [thread:$0]  %s0, 256, %s21, [#allocation3], 128, 128, 8
    $region5: #{tpu_custom_call.1} parent=1 // pred_fallthru
      _
    // Predicated region
    $region6: #{tpu_custom_call.1} parent=1 // pred_check
      _
    $region7: #{tpu_custom_call.1} parent=1 // pred_check_branch
      %28 = sbr.rel (0) target = $region9
    $region8: #{tpu_custom_call.1} parent=1 // pred_region
      %s30 = ssub.s32 1024, 1024
      %31 = vsyncadd [#allocation6], %s30
      %s32 = sshll.u32 [#allocation5], 4
      %s33 = int_to_ptr.vmem [resolvable:$true] %s32
      %38 = dma.hbm_to_vmem [thread:$0]  %s1, 1024, %s33, [#allocation6], 256, 256, 16
    $region9: #{tpu_custom_call.1} parent=1 // pred_fallthru
      _
    // Predicated region
    $region10: #{tpu_custom_call.1} parent=1 // pred_check
      _
    $region11: #{tpu_custom_call.1} parent=1 // pred_check_branch
      %40 = sbr.rel (0) target = $region13
    $region12: #{tpu_custom_call.1} parent=1 // pred_region
      %s42 = ssub.s32 512, 512
      %43 = vsyncadd [#allocation6], %s42
      %s44 = sshll.u32 [#allocation7], 4
      %s45 = int_to_ptr.vmem [resolvable:$true] %s44
      %50 = dma.hbm_to_vmem [thread:$0]  %s2, 512, %s45, [#allocation6], 128, 128, 8
    $region13: #{tpu_custom_call.1} parent=1 // pred_fallthru
      _
    // Predicated region
    $region14: #{tpu_custom_call.1} parent=1 // pred_check
      _
    $region15: #{tpu_custom_call.1} parent=1 // pred_check_branch
      %52 = sbr.rel (0) target = $region17
    $region16: #{tpu_custom_call.1} parent=1 // pred_region
      %s54 = ssub.s32 256, 256
      %55 = vsyncadd [#allocation9], %s54
      %s56 = sshll.u32 [#allocation8], 4
      %s57 = int_to_ptr.vmem [resolvable:$true] %s56
      %62 = dma.hbm_to_vmem [thread:$0]  %s3, 256, %s57, [#allocation9], 128, 128, 8
    $region17: #{tpu_custom_call.1} parent=1 // pred_fallthru
      _
    // Predicated region
    $region18: #{tpu_custom_call.1} parent=1 // pred_check
      _
    $region19: #{tpu_custom_call.1} parent=1 // pred_check_branch
      %64 = sbr.rel (0) target = $region21
    $region20: #{tpu_custom_call.1} parent=1 // pred_region
      %s66 = ssub.s32 512, 512
      %67 = vsyncadd [#allocation9], %s66
      %s68 = sshll.u32 [#allocation10], 4
      %s69 = int_to_ptr.vmem [resolvable:$true] %s68
      %74 = dma.hbm_to_vmem [thread:$0]  %s4, 512, %s69, [#allocation9], 128, 128, 8
    $region21: #{tpu_custom_call.1} parent=1 // pred_fallthru
      _
    // Predicated region
    $region22: #{tpu_custom_call.1} parent=1 // pred_check
      _
    $region23: #{tpu_custom_call.1} parent=1 // pred_check_branch
      %76 = sbr.rel (0) target = $region25
    $region24: #{tpu_custom_call.1} parent=1 // pred_region
      _
    $region25: #{tpu_custom_call.1} parent=1 // pred_fallthru
      _
    // Predicated region
    $region26: #{tpu_custom_call.1} parent=1 // pred_check
      _
    $region27: #{tpu_custom_call.1} parent=1 // pred_check_branch
      %78 = sbr.rel (0) target = $region29
    $region28: #{tpu_custom_call.1} parent=1 // pred_region
      %79 = dma.done [#allocation3], 256
    $region29: #{tpu_custom_call.1} parent=1 // pred_fallthru
      _
    // Predicated region
    $region30: #{tpu_custom_call.1} parent=1 // pred_check
      _
    $region31: #{tpu_custom_call.1} parent=1 // pred_check_branch
      %81 = sbr.rel (0) target = $region33
    $region32: #{tpu_custom_call.1} parent=1 // pred_region
      %82 = dma.done [#allocation6], 1024
    $region33: #{tpu_custom_call.1} parent=1 // pred_fallthru
      _
    // Predicated region
    $region34: #{tpu_custom_call.1} parent=1 // pred_check
      _
    $region35: #{tpu_custom_call.1} parent=1 // pred_check_branch
      %84 = sbr.rel (0) target = $region37
    $region36: #{tpu_custom_call.1} parent=1 // pred_region
      %85 = dma.done [#allocation6], 512
    $region37: #{tpu_custom_call.1} parent=1 // pred_fallthru
      _
    // Predicated region
    $region38: #{tpu_custom_call.1} parent=1 // pred_check
      _
    $region39: #{tpu_custom_call.1} parent=1 // pred_check_branch
      %87 = sbr.rel (0) target = $region41
    $region40: #{tpu_custom_call.1} parent=1 // pred_region
      %88 = dma.done [#allocation9], 256
    $region41: #{tpu_custom_call.1} parent=1 // pred_fallthru
      _
    // Predicated region
    $region42: #{tpu_custom_call.1} parent=1 // pred_check
      _
    $region43: #{tpu_custom_call.1} parent=1 // pred_check_branch
      %90 = sbr.rel (0) target = $region45
    $region44: #{tpu_custom_call.1} parent=1 // pred_region
      %91 = dma.done [#allocation9], 512
    $region45: #{tpu_custom_call.1} parent=1 // pred_fallthru
      _
    %v92 = vld [vmem:[#allocation2] sm:$0xff]
    %v93 = vld [vmem:[#allocation2 + $0x8] sm:$0xff]
    %v94 = vld [vmem:[#allocation5] sm:$0xff]
    %v95 = vld [vmem:[#allocation5 + $0x8] sm:$0xff]
    %v96 = vld [vmem:[#allocation5 + $0x10] sm:$0xff]
    %v97 = vld [vmem:[#allocation5 + $0x18] sm:$0xff]
    %v98 = vld [vmem:[#allocation5 + $0x20] sm:$0xff]
    %v99 = vld [vmem:[#allocation5 + $0x28] sm:$0xff]
    %v100 = vld [vmem:[#allocation5 + $0x30] sm:$0xff]
    %v101 = vld [vmem:[#allocation5 + $0x38] sm:$0xff]
    %vm102 = vcmask 261120
    %v104 = vsel %vm102, %v92, 0
    %v107 = vsel %vm102, %v93, 0
    %109 = vmatprep.subr.mxu0 %v95
    %110 = vmatpush1.msra.mxu0 %v94
    %111 = vmatprep.subr.mxu0 %v97
    %112 = vmatpush1.msra.mxu0 %v96
    %113 = vmatprep.subr.mxu0 %v99
    %114 = vmatpush1.msra.mxu0 %v98
    %115 = vmatprep.subr.mxu0 %v101
    %116 = vmatpush1.msra.mxu0 %v100
    %117 = vmatprep.subr.mxu0 0.0
    %118 = vmatpush1.msra.mxu0 0.0
    %119 = vmatprep.subr.mxu0 0.0
    %120 = vmatpush1.msra.mxu0 0.0
    %121 = vmatprep.subr.mxu0 0.0
    %122 = vmatpush1.msra.mxu0 0.0
    %123 = vmatprep.subr.mxu0 0.0
    %124 = vmatpush1.msra.mxu0 0.0
    %125 = vmatprep.subr.mxu0 0.0
    %126 = vmatpush1.msra.mxu0 0.0
    %127 = vmatprep.subr.mxu0 0.0
    %128 = vmatpush1.msra.mxu0 0.0
    %129 = vmatprep.subr.mxu0 0.0
    %130 = vmatpush1.msra.mxu0 0.0
    %131 = vmatprep.subr.mxu0 0.0
    %132 = vmatpush1.msra.mxu0 0.0
    %133 = vmatprep.subr.mxu0 0.0
    %134 = vmatpush1.msra.mxu0 0.0
    %135 = vmatprep.subr.mxu0 0.0
    %136 = vmatpush1.msra.mxu0 0.0
    %137 = vmatprep.subr.mxu0 0.0
    %138 = vmatpush1.msra.mxu0 0.0
    %139 = vmatprep.subr.mxu0 0.0
    %140 = vmatpush1.msra.mxu0 0.0
    %141 = vmatprep.subr.mxu0 0.0
    %142 = vmatpush1.msra.mxu0 0.0
    %143 = vmatprep.subr.mxu0 0.0
    %144 = vmatpush1.msra.mxu0 0.0
    %145 = vmatprep.subr.mxu0 0.0
    %146 = vmatpush1.msra.mxu0 0.0
    %147 = vmatprep.subr.mxu0 0.0
    %148 = vmatpush1.msra.mxu0 0.0
    %149 = vmatprep.subr.mxu0 0.0
    %150 = vmatpush1.msra.mxu0 0.0
    %151 = vmatprep.subr.mxu0 0.0
    %152 = vmatpush1.msra.mxu0 0.0
    %153 = vmatprep.subr.mxu0 0.0
    %154 = vmatpush1.msra.mxu0 0.0
    %155 = vmatprep.subr.mxu0 0.0
    %156 = vmatpush1.msra.mxu0 0.0
    %157 = vmatprep.subr.mxu0 0.0
    %158 = vmatpush1.msra.mxu0 0.0
    %159 = vmatprep.subr.mxu0 0.0
    %160 = vmatpush1.msra.mxu0 0.0
    %161 = vmatprep.subr.mxu0 0.0
    %162 = vmatpush1.msra.mxu0 0.0
    %163 = vmatprep.subr.mxu0 0.0
    %164 = vmatpush1.msra.mxu0 0.0
    %165 = vmatprep.subr.mxu0 0.0
    %166 = vmatpush1.msra.mxu0 0.0
    %167 = vmatprep.subr.mxu0 0.0
    %168 = vmatpush1.msra.mxu0 0.0
    %169 = vmatprep.subr.mxu0 0.0
    %170 = vmatpush1.msra.mxu0 0.0
    %171 = vmatprep.subr.mxu0 0.0
    %172 = vmatpush1.msra.mxu0 0.0
    %173 = vmatprep.mubr.f32.mxu0 0.0
    %174 = vmatmul.mubr.f32.gmra.mrb[0].mxu0 %v104
    %v175 = vpop.f32.mrb[0].mxu0
    %v176 = vadd.f32 0.0, %v175
    %v177 = vpop.f32.mrb[0].mxu0
    %v178 = vadd.f32 0.0, %v177
    %179 = vmatprep.mubr.f32.mxu0 0.0
    %180 = vmatmul.mubr.f32.gmra.mrb[0].mxu0 %v107
    %v181 = vpop.f32.mrb[0].mxu0
    %v182 = vadd.f32 0.0, %v181
    %v183 = vpop.f32.mrb[0].mxu0
    %v184 = vadd.f32 0.0, %v183
    %185 = vdwg.mxu0
    %v186 = vld [vmem:[#allocation7] sm:$0xff]
    %v187 = vld [vmem:[#allocation7 + $0x8] sm:$0xff]
    %v188 = vmul.f32 %v176, %v186
    %v189 = vmul.f32 %v182, %v187
    %s190 = scalar_lea.vmem [#allocation7], 16
    %v191 = vld [vmem:[%s190] sm:$0xff]
    %v192 = vld [vmem:[%s190 + $0x8] sm:$0xff]
    %195 = vrot.lane.b32.xlu0 %v191, 64
    %v196 = vpop.permute.xlu0 %195
    %197 = vrot.lane.b32.xlu0 %v192, 64
    %v198 = vpop.permute.xlu0 %197
    %v201 = vmul.f32 %v176, %v196
    %v202 = vmul.f32 %v182, %v198
    %205 = vrot.lane.b32.xlu0 %v201, 64
    %v206 = vpop.permute.xlu0 %205
    %207 = vrot.lane.b32.xlu0 %v202, 64
    %v208 = vpop.permute.xlu0 %207
    %v211 = vadd.f32 %v188, %v206
    %v212 = vadd.f32 %v189, %v208
    %215 = vrot.lane.b32.xlu0 %v211, 120
    %v216 = vpop.permute.xlu0 %215
    %217 = vrot.lane.b32.xlu0 %v212, 120
    %v218 = vpop.permute.xlu0 %217
    %221 = vrot.lane.b32.xlu0 %v211, 112
    %v222 = vpop.permute.xlu0 %221
    %223 = vrot.lane.b32.xlu0 %v212, 112
    %v224 = vpop.permute.xlu0 %223
    %227 = vrot.lane.b32.xlu0 %v211, 104
    %v228 = vpop.permute.xlu0 %227
    %229 = vrot.lane.b32.xlu0 %v212, 104
    %v230 = vpop.permute.xlu0 %229
    %233 = vrot.lane.b32.xlu0 %v211, 96
    %v234 = vpop.permute.xlu0 %233
    %235 = vrot.lane.b32.xlu0 %v212, 96
    %v236 = vpop.permute.xlu0 %235
    %239 = vrot.lane.b32.xlu0 %v211, 88
    %v240 = vpop.permute.xlu0 %239
    %241 = vrot.lane.b32.xlu0 %v212, 88
    %v242 = vpop.permute.xlu0 %241
    %245 = vrot.lane.b32.xlu0 %v211, 80
    %v246 = vpop.permute.xlu0 %245
    %247 = vrot.lane.b32.xlu0 %v212, 80
    %v248 = vpop.permute.xlu0 %247
    %251 = vrot.lane.b32.xlu0 %v211, 72
    %v252 = vpop.permute.xlu0 %251
    %253 = vrot.lane.b32.xlu0 %v212, 72
    %v254 = vpop.permute.xlu0 %253
    %v257 = vcombine.low %v211, %v222
    %v258 = vcombine.high %v211, %v222
    %v260 = vunpack.c.l.s4 1983009808
    %v261 = vunpack.c.0.s8 %v260
    %v262 = vlaneseq
    %v263 = vshrl.u32 %v262, 7
    %v264 = vsub.s32 %v261, %v263
    %v265 = vrot.slane %v257, %v264
    %v267 = vunpack.c.l.s4 1983009808
    %v268 = vunpack.c.0.s8 %v267
    %v269 = vlaneseq
    %v270 = vshrl.u32 %v269, 7
    %v271 = vsub.s32 %v268, %v270
    %v272 = vrot.slane %v258, %v271
    %v273 = vcombine.low %v216, %v228
    %v274 = vcombine.high %v216, %v228
    %v276 = vunpack.c.l.s4 1983009808
    %v277 = vunpack.c.0.s8 %v276
    %v278 = vlaneseq
    %v279 = vshrl.u32 %v278, 7
    %v280 = vsub.s32 %v277, %v279
    %v281 = vrot.slane %v273, %v280
    %v283 = vunpack.c.l.s4 1983009808
    %v284 = vunpack.c.0.s8 %v283
    %v285 = vlaneseq
    %v286 = vshrl.u32 %v285, 7
    %v287 = vsub.s32 %v284, %v286
    %v288 = vrot.slane %v274, %v287
    %v289 = vcombine.low %v234, %v246
    %v290 = vcombine.high %v234, %v246
    %v292 = vunpack.c.l.s4 1983009808
    %v293 = vunpack.c.0.s8 %v292
    %v294 = vlaneseq
    %v295 = vshrl.u32 %v294, 7
    %v296 = vsub.s32 %v293, %v295
    %v297 = vrot.slane %v289, %v296
    %v299 = vunpack.c.l.s4 1983009808
    %v300 = vunpack.c.0.s8 %v299
    %v301 = vlaneseq
    %v302 = vshrl.u32 %v301, 7
    %v303 = vsub.s32 %v300, %v302
    %v304 = vrot.slane %v290, %v303
    %v305 = vcombine.low %v240, %v252
    %v306 = vcombine.high %v240, %v252
    %v308 = vunpack.c.l.s4 1983009808
    %v309 = vunpack.c.0.s8 %v308
    %v310 = vlaneseq
    %v311 = vshrl.u32 %v310, 7
    %v312 = vsub.s32 %v309, %v311
    %v313 = vrot.slane %v305, %v312
    %v315 = vunpack.c.l.s4 1983009808
    %v316 = vunpack.c.0.s8 %v315
    %v317 = vlaneseq
    %v318 = vshrl.u32 %v317, 7
    %v319 = vsub.s32 %v316, %v318
    %v320 = vrot.slane %v306, %v319
    %v321 = vcombine.low %v265, %v281
    %v322 = vcombine.high %v265, %v281
    %v324 = vunpack.c.l.s4 1934713408
    %v325 = vunpack.c.0.s8 %v324
    %v326 = vlaneseq
    %v327 = vshrl.u32 %v326, 7
    %v328 = vsub.s32 %v325, %v327
    %v329 = vrot.slane %v321, %v328
    %v331 = vunpack.c.l.s4 1934713408
    %v332 = vunpack.c.0.s8 %v331
    %v333 = vlaneseq
    %v334 = vshrl.u32 %v333, 7
    %v335 = vsub.s32 %v332, %v334
    %v336 = vrot.slane %v322, %v335
    %v337 = vcombine.low %v272, %v288
    %v338 = vcombine.high %v272, %v288
    %v340 = vunpack.c.l.s4 1934713408
    %v341 = vunpack.c.0.s8 %v340
    %v342 = vlaneseq
    %v343 = vshrl.u32 %v342, 7
    %v344 = vsub.s32 %v341, %v343
    %v345 = vrot.slane %v337, %v344
    %v347 = vunpack.c.l.s4 1934713408
    %v348 = vunpack.c.0.s8 %v347
    %v349 = vlaneseq
    %v350 = vshrl.u32 %v349, 7
    %v351 = vsub.s32 %v348, %v350
    %v352 = vrot.slane %v338, %v351
    %v353 = vcombine.low %v297, %v313
    %v354 = vcombine.high %v297, %v313
    %v356 = vunpack.c.l.s4 1934713408
    %v357 = vunpack.c.0.s8 %v356
    %v358 = vlaneseq
    %v359 = vshrl.u32 %v358, 7
    %v360 = vsub.s32 %v357, %v359
    %v361 = vrot.slane %v353, %v360
    %v363 = vunpack.c.l.s4 1934713408
    %v364 = vunpack.c.0.s8 %v363
    %v365 = vlaneseq
    %v366 = vshrl.u32 %v365, 7
    %v367 = vsub.s32 %v364, %v366
    %v368 = vrot.slane %v354, %v367
    %v369 = vcombine.low %v304, %v320
    %v370 = vcombine.high %v304, %v320
    %v372 = vunpack.c.l.s4 1934713408
    %v373 = vunpack.c.0.s8 %v372
    %v374 = vlaneseq
    %v375 = vshrl.u32 %v374, 7
    %v376 = vsub.s32 %v373, %v375
    %v377 = vrot.slane %v369, %v376
    %v379 = vunpack.c.l.s4 1934713408
    %v380 = vunpack.c.0.s8 %v379
    %v381 = vlaneseq
    %v382 = vshrl.u32 %v381, 7
    %v383 = vsub.s32 %v380, %v382
    %v384 = vrot.slane %v370, %v383
    %v385 = vcombine.low %v329, %v361
    %v386 = vcombine.high %v329, %v361
    %v387 = vcombine.low %v336, %v368
    %v388 = vcombine.high %v336, %v368
    %v389 = vcombine.low %v345, %v377
    %v390 = vcombine.high %v345, %v377
    %v391 = vcombine.low %v352, %v384
    %v392 = vcombine.high %v352, %v384
    %v393 = vcombine.low %v212, %v224
    %v394 = vcombine.high %v212, %v224
    %v396 = vunpack.c.l.s4 1983009808
    %v397 = vunpack.c.0.s8 %v396
    %v398 = vlaneseq
    %v399 = vshrl.u32 %v398, 7
    %v400 = vsub.s32 %v397, %v399
    %v401 = vrot.slane %v393, %v400
    %v403 = vunpack.c.l.s4 1983009808
    %v404 = vunpack.c.0.s8 %v403
    %v405 = vlaneseq
    %v406 = vshrl.u32 %v405, 7
    %v407 = vsub.s32 %v404, %v406
    %v408 = vrot.slane %v394, %v407
    %v409 = vcombine.low %v218, %v230
    %v410 = vcombine.high %v218, %v230
    %v412 = vunpack.c.l.s4 1983009808
    %v413 = vunpack.c.0.s8 %v412
    %v414 = vlaneseq
    %v415 = vshrl.u32 %v414, 7
    %v416 = vsub.s32 %v413, %v415
    %v417 = vrot.slane %v409, %v416
    %v419 = vunpack.c.l.s4 1983009808
    %v420 = vunpack.c.0.s8 %v419
    %v421 = vlaneseq
    %v422 = vshrl.u32 %v421, 7
    %v423 = vsub.s32 %v420, %v422
    %v424 = vrot.slane %v410, %v423
    %v425 = vcombine.low %v236, %v248
    %v426 = vcombine.high %v236, %v248
    %v428 = vunpack.c.l.s4 1983009808
    %v429 = vunpack.c.0.s8 %v428
    %v430 = vlaneseq
    %v431 = vshrl.u32 %v430, 7
    %v432 = vsub.s32 %v429, %v431
    %v433 = vrot.slane %v425, %v432
    %v435 = vunpack.c.l.s4 1983009808
    %v436 = vunpack.c.0.s8 %v435
    %v437 = vlaneseq
    %v438 = vshrl.u32 %v437, 7
    %v439 = vsub.s32 %v436, %v438
    %v440 = vrot.slane %v426, %v439
    %v441 = vcombine.low %v242, %v254
    %v442 = vcombine.high %v242, %v254
    %v444 = vunpack.c.l.s4 1983009808
    %v445 = vunpack.c.0.s8 %v444
    %v446 = vlaneseq
    %v447 = vshrl.u32 %v446, 7
    %v448 = vsub.s32 %v445, %v447
    %v449 = vrot.slane %v441, %v448
    %v451 = vunpack.c.l.s4 1983009808
    %v452 = vunpack.c.0.s8 %v451
    %v453 = vlaneseq
    %v454 = vshrl.u32 %v453, 7
    %v455 = vsub.s32 %v452, %v454
    %v456 = vrot.slane %v442, %v455
    %v457 = vcombine.low %v401, %v417
    %v458 = vcombine.high %v401, %v417
    %v460 = vunpack.c.l.s4 1934713408
    %v461 = vunpack.c.0.s8 %v460
    %v462 = vlaneseq
    %v463 = vshrl.u32 %v462, 7
    %v464 = vsub.s32 %v461, %v463
    %v465 = vrot.slane %v457, %v464
    %v467 = vunpack.c.l.s4 1934713408
    %v468 = vunpack.c.0.s8 %v467
    %v469 = vlaneseq
    %v470 = vshrl.u32 %v469, 7
    %v471 = vsub.s32 %v468, %v470
    %v472 = vrot.slane %v458, %v471
    %v473 = vcombine.low %v408, %v424
    %v474 = vcombine.high %v408, %v424
    %v476 = vunpack.c.l.s4 1934713408
    %v477 = vunpack.c.0.s8 %v476
    %v478 = vlaneseq
    %v479 = vshrl.u32 %v478, 7
    %v480 = vsub.s32 %v477, %v479
    %v481 = vrot.slane %v473, %v480
    %v483 = vunpack.c.l.s4 1934713408
    %v484 = vunpack.c.0.s8 %v483
    %v485 = vlaneseq
    %v486 = vshrl.u32 %v485, 7
    %v487 = vsub.s32 %v484, %v486
    %v488 = vrot.slane %v474, %v487
    %v489 = vcombine.low %v433, %v449
    %v490 = vcombine.high %v433, %v449
    %v492 = vunpack.c.l.s4 1934713408
    %v493 = vunpack.c.0.s8 %v492
    %v494 = vlaneseq
    %v495 = vshrl.u32 %v494, 7
    %v496 = vsub.s32 %v493, %v495
    %v497 = vrot.slane %v489, %v496
    %v499 = vunpack.c.l.s4 1934713408
    %v500 = vunpack.c.0.s8 %v499
    %v501 = vlaneseq
    %v502 = vshrl.u32 %v501, 7
    %v503 = vsub.s32 %v500, %v502
    %v504 = vrot.slane %v490, %v503
    %v505 = vcombine.low %v440, %v456
    %v506 = vcombine.high %v440, %v456
    %v508 = vunpack.c.l.s4 1934713408
    %v509 = vunpack.c.0.s8 %v508
    %v510 = vlaneseq
    %v511 = vshrl.u32 %v510, 7
    %v512 = vsub.s32 %v509, %v511
    %v513 = vrot.slane %v505, %v512
    %v515 = vunpack.c.l.s4 1934713408
    %v516 = vunpack.c.0.s8 %v515
    %v517 = vlaneseq
    %v518 = vshrl.u32 %v517, 7
    %v519 = vsub.s32 %v516, %v518
    %v520 = vrot.slane %v506, %v519
    %v521 = vcombine.low %v465, %v497
    %v522 = vcombine.high %v465, %v497
    %v523 = vcombine.low %v472, %v504
    %v524 = vcombine.high %v472, %v504
    %v525 = vcombine.low %v481, %v513
    %v526 = vcombine.high %v481, %v513
    %v527 = vcombine.low %v488, %v520
    %v528 = vcombine.high %v488, %v520
    %v529 = vcombine.low %v385, %v387
    %v530 = vcombine.high %v385, %v387
    %v532 = vunpack.c.l.s4 1983009808
    %v533 = vunpack.c.0.s8 %v532
    %v534 = vlaneseq
    %v535 = vshrl.u32 %v534, 7
    %v536 = vsub.s32 %v533, %v535
    %v537 = vrot.slane %v529, %v536
    %v539 = vunpack.c.l.s4 1983009808
    %v540 = vunpack.c.0.s8 %v539
    %v541 = vlaneseq
    %v542 = vshrl.u32 %v541, 7
    %v543 = vsub.s32 %v540, %v542
    %v544 = vrot.slane %v530, %v543
    %v545 = vcombine.low %v386, %v388
    %v546 = vcombine.high %v386, %v388
    %v548 = vunpack.c.l.s4 1983009808
    %v549 = vunpack.c.0.s8 %v548
    %v550 = vlaneseq
    %v551 = vshrl.u32 %v550, 7
    %v552 = vsub.s32 %v549, %v551
    %v553 = vrot.slane %v545, %v552
    %v555 = vunpack.c.l.s4 1983009808
    %v556 = vunpack.c.0.s8 %v555
    %v557 = vlaneseq
    %v558 = vshrl.u32 %v557, 7
    %v559 = vsub.s32 %v556, %v558
    %v560 = vrot.slane %v546, %v559
    %v561 = vcombine.low %v389, %v391
    %v562 = vcombine.high %v389, %v391
    %v564 = vunpack.c.l.s4 1983009808
    %v565 = vunpack.c.0.s8 %v564
    %v566 = vlaneseq
    %v567 = vshrl.u32 %v566, 7
    %v568 = vsub.s32 %v565, %v567
    %v569 = vrot.slane %v561, %v568
    %v571 = vunpack.c.l.s4 1983009808
    %v572 = vunpack.c.0.s8 %v571
    %v573 = vlaneseq
    %v574 = vshrl.u32 %v573, 7
    %v575 = vsub.s32 %v572, %v574
    %v576 = vrot.slane %v562, %v575
    %v577 = vcombine.low %v390, %v392
    %v578 = vcombine.high %v390, %v392
    %v580 = vunpack.c.l.s4 1983009808
    %v581 = vunpack.c.0.s8 %v580
    %v582 = vlaneseq
    %v583 = vshrl.u32 %v582, 7
    %v584 = vsub.s32 %v581, %v583
    %v585 = vrot.slane %v577, %v584
    %v587 = vunpack.c.l.s4 1983009808
    %v588 = vunpack.c.0.s8 %v587
    %v589 = vlaneseq
    %v590 = vshrl.u32 %v589, 7
    %v591 = vsub.s32 %v588, %v590
    %v592 = vrot.slane %v578, %v591
    %v593 = vcombine.low %v537, %v553
    %v594 = vcombine.high %v537, %v553
    %v596 = vunpack.c.l.s4 1934713408
    %v597 = vunpack.c.0.s8 %v596
    %v598 = vlaneseq
    %v599 = vshrl.u32 %v598, 7
    %v600 = vsub.s32 %v597, %v599
    %v601 = vrot.slane %v593, %v600
    %v603 = vunpack.c.l.s4 1934713408
    %v604 = vunpack.c.0.s8 %v603
    %v605 = vlaneseq
    %v606 = vshrl.u32 %v605, 7
    %v607 = vsub.s32 %v604, %v606
    %v608 = vrot.slane %v594, %v607
    %v609 = vcombine.low %v544, %v560
    %v610 = vcombine.high %v544, %v560
    %v612 = vunpack.c.l.s4 1934713408
    %v613 = vunpack.c.0.s8 %v612
    %v614 = vlaneseq
    %v615 = vshrl.u32 %v614, 7
    %v616 = vsub.s32 %v613, %v615
    %v617 = vrot.slane %v609, %v616
    %v619 = vunpack.c.l.s4 1934713408
    %v620 = vunpack.c.0.s8 %v619
    %v621 = vlaneseq
    %v622 = vshrl.u32 %v621, 7
    %v623 = vsub.s32 %v620, %v622
    %v624 = vrot.slane %v610, %v623
    %v625 = vcombine.low %v569, %v585
    %v626 = vcombine.high %v569, %v585
    %v628 = vunpack.c.l.s4 1934713408
    %v629 = vunpack.c.0.s8 %v628
    %v630 = vlaneseq
    %v631 = vshrl.u32 %v630, 7
    %v632 = vsub.s32 %v629, %v631
    %v633 = vrot.slane %v625, %v632
    %v635 = vunpack.c.l.s4 1934713408
    %v636 = vunpack.c.0.s8 %v635
    %v637 = vlaneseq
    %v638 = vshrl.u32 %v637, 7
    %v639 = vsub.s32 %v636, %v638
    %v640 = vrot.slane %v626, %v639
    %v641 = vcombine.low %v576, %v592
    %v642 = vcombine.high %v576, %v592
    %v644 = vunpack.c.l.s4 1934713408
    %v645 = vunpack.c.0.s8 %v644
    %v646 = vlaneseq
    %v647 = vshrl.u32 %v646, 7
    %v648 = vsub.s32 %v645, %v647
    %v649 = vrot.slane %v641, %v648
    %v651 = vunpack.c.l.s4 1934713408
    %v652 = vunpack.c.0.s8 %v651
    %v653 = vlaneseq
    %v654 = vshrl.u32 %v653, 7
    %v655 = vsub.s32 %v652, %v654
    %v656 = vrot.slane %v642, %v655
    %v657 = vcombine.low %v601, %v633
    %v658 = vcombine.high %v601, %v633
    %v659 = vcombine.low %v608, %v640
    %v660 = vcombine.high %v608, %v640
    %v661 = vcombine.low %v617, %v649
    %v662 = vcombine.high %v617, %v649
    %v663 = vcombine.low %v624, %v656
    %v664 = vcombine.high %v624, %v656
    %v665 = vcombine.low %v521, %v523
    %v666 = vcombine.high %v521, %v523
    %v668 = vunpack.c.l.s4 1983009808
    %v669 = vunpack.c.0.s8 %v668
    %v670 = vlaneseq
    %v671 = vshrl.u32 %v670, 7
    %v672 = vsub.s32 %v669, %v671
    %v673 = vrot.slane %v665, %v672
    %v675 = vunpack.c.l.s4 1983009808
    %v676 = vunpack.c.0.s8 %v675
    %v677 = vlaneseq
    %v678 = vshrl.u32 %v677, 7
    %v679 = vsub.s32 %v676, %v678
    %v680 = vrot.slane %v666, %v679
    %v681 = vcombine.low %v522, %v524
    %v682 = vcombine.high %v522, %v524
    %v684 = vunpack.c.l.s4 1983009808
    %v685 = vunpack.c.0.s8 %v684
    %v686 = vlaneseq
    %v687 = vshrl.u32 %v686, 7
    %v688 = vsub.s32 %v685, %v687
    %v689 = vrot.slane %v681, %v688
    %v691 = vunpack.c.l.s4 1983009808
    %v692 = vunpack.c.0.s8 %v691
    %v693 = vlaneseq
    %v694 = vshrl.u32 %v693, 7
    %v695 = vsub.s32 %v692, %v694
    %v696 = vrot.slane %v682, %v695
    %v697 = vcombine.low %v525, %v527
    %v698 = vcombine.high %v525, %v527
    %v700 = vunpack.c.l.s4 1983009808
    %v701 = vunpack.c.0.s8 %v700
    %v702 = vlaneseq
    %v703 = vshrl.u32 %v702, 7
    %v704 = vsub.s32 %v701, %v703
    %v705 = vrot.slane %v697, %v704
    %v707 = vunpack.c.l.s4 1983009808
    %v708 = vunpack.c.0.s8 %v707
    %v709 = vlaneseq
    %v710 = vshrl.u32 %v709, 7
    %v711 = vsub.s32 %v708, %v710
    %v712 = vrot.slane %v698, %v711
    %v713 = vcombine.low %v526, %v528
    %v714 = vcombine.high %v526, %v528
    %v716 = vunpack.c.l.s4 1983009808
    %v717 = vunpack.c.0.s8 %v716
    %v718 = vlaneseq
    %v719 = vshrl.u32 %v718, 7
    %v720 = vsub.s32 %v717, %v719
    %v721 = vrot.slane %v713, %v720
    %v723 = vunpack.c.l.s4 1983009808
    %v724 = vunpack.c.0.s8 %v723
    %v725 = vlaneseq
    %v726 = vshrl.u32 %v725, 7
    %v727 = vsub.s32 %v724, %v726
    %v728 = vrot.slane %v714, %v727
    %v729 = vcombine.low %v673, %v689
    %v730 = vcombine.high %v673, %v689
    %v732 = vunpack.c.l.s4 1934713408
    %v733 = vunpack.c.0.s8 %v732
    %v734 = vlaneseq
    %v735 = vshrl.u32 %v734, 7
    %v736 = vsub.s32 %v733, %v735
    %v737 = vrot.slane %v729, %v736
    %v739 = vunpack.c.l.s4 1934713408
    %v740 = vunpack.c.0.s8 %v739
    %v741 = vlaneseq
    %v742 = vshrl.u32 %v741, 7
    %v743 = vsub.s32 %v740, %v742
    %v744 = vrot.slane %v730, %v743
    %v745 = vcombine.low %v680, %v696
    %v746 = vcombine.high %v680, %v696
    %v748 = vunpack.c.l.s4 1934713408
    %v749 = vunpack.c.0.s8 %v748
    %v750 = vlaneseq
    %v751 = vshrl.u32 %v750, 7
    %v752 = vsub.s32 %v749, %v751
    %v753 = vrot.slane %v745, %v752
    %v755 = vunpack.c.l.s4 1934713408
    %v756 = vunpack.c.0.s8 %v755
    %v757 = vlaneseq
    %v758 = vshrl.u32 %v757, 7
    %v759 = vsub.s32 %v756, %v758
    %v760 = vrot.slane %v746, %v759
    %v761 = vcombine.low %v705, %v721
    %v762 = vcombine.high %v705, %v721
    %v764 = vunpack.c.l.s4 1934713408
    %v765 = vunpack.c.0.s8 %v764
    %v766 = vlaneseq
    %v767 = vshrl.u32 %v766, 7
    %v768 = vsub.s32 %v765, %v767
    %v769 = vrot.slane %v761, %v768
    %v771 = vunpack.c.l.s4 1934713408
    %v772 = vunpack.c.0.s8 %v771
    %v773 = vlaneseq
    %v774 = vshrl.u32 %v773, 7
    %v775 = vsub.s32 %v772, %v774
    %v776 = vrot.slane %v762, %v775
    %v777 = vcombine.low %v712, %v728
    %v778 = vcombine.high %v712, %v728
    %v780 = vunpack.c.l.s4 1934713408
    %v781 = vunpack.c.0.s8 %v780
    %v782 = vlaneseq
    %v783 = vshrl.u32 %v782, 7
    %v784 = vsub.s32 %v781, %v783
    %v785 = vrot.slane %v777, %v784
    %v787 = vunpack.c.l.s4 1934713408
    %v788 = vunpack.c.0.s8 %v787
    %v789 = vlaneseq
    %v790 = vshrl.u32 %v789, 7
    %v791 = vsub.s32 %v788, %v790
    %v792 = vrot.slane %v778, %v791
    %v793 = vcombine.low %v737, %v769
    %v794 = vcombine.high %v737, %v769
    %v795 = vcombine.low %v744, %v776
    %v796 = vcombine.high %v744, %v776
    %v797 = vcombine.low %v753, %v785
    %v798 = vcombine.high %v753, %v785
    %v799 = vcombine.low %v760, %v792
    %v800 = vcombine.high %v760, %v792
    %803 = vrot.lane.b32.xlu0 %v178, 120
    %v804 = vpop.permute.xlu0 %803
    %805 = vrot.lane.b32.xlu0 %v184, 120
    %v806 = vpop.permute.xlu0 %805
    %809 = vrot.lane.b32.xlu0 %v178, 112
    %v810 = vpop.permute.xlu0 %809
    %811 = vrot.lane.b32.xlu0 %v184, 112
    %v812 = vpop.permute.xlu0 %811
    %815 = vrot.lane.b32.xlu0 %v178, 104
    %v816 = vpop.permute.xlu0 %815
    %817 = vrot.lane.b32.xlu0 %v184, 104
    %v818 = vpop.permute.xlu0 %817
    %v821 = vcombine.low %v178, %v810
    %v822 = vcombine.high %v178, %v810
    %v824 = vunpack.c.l.s4 1983009808
    %v825 = vunpack.c.0.s8 %v824
    %v826 = vlaneseq
    %v827 = vshrl.u32 %v826, 7
    %v828 = vsub.s32 %v825, %v827
    %v829 = vrot.slane %v821, %v828
    %v831 = vunpack.c.l.s4 1983009808
    %v832 = vunpack.c.0.s8 %v831
    %v833 = vlaneseq
    %v834 = vshrl.u32 %v833, 7
    %v835 = vsub.s32 %v832, %v834
    %v836 = vrot.slane %v822, %v835
    %v837 = vcombine.low %v804, %v816
    %v838 = vcombine.high %v804, %v816
    %v840 = vunpack.c.l.s4 1983009808
    %v841 = vunpack.c.0.s8 %v840
    %v842 = vlaneseq
    %v843 = vshrl.u32 %v842, 7
    %v844 = vsub.s32 %v841, %v843
    %v845 = vrot.slane %v837, %v844
    %v847 = vunpack.c.l.s4 1983009808
    %v848 = vunpack.c.0.s8 %v847
    %v849 = vlaneseq
    %v850 = vshrl.u32 %v849, 7
    %v851 = vsub.s32 %v848, %v850
    %v852 = vrot.slane %v838, %v851
    %v853 = vcombine.low %v829, %v845
    %v854 = vcombine.high %v829, %v845
    %v856 = vunpack.c.l.s4 1934713408
    %v857 = vunpack.c.0.s8 %v856
    %v858 = vlaneseq
    %v859 = vshrl.u32 %v858, 7
    %v860 = vsub.s32 %v857, %v859
    %v861 = vrot.slane %v853, %v860
    %v863 = vunpack.c.l.s4 1934713408
    %v864 = vunpack.c.0.s8 %v863
    %v865 = vlaneseq
    %v866 = vshrl.u32 %v865, 7
    %v867 = vsub.s32 %v864, %v866
    %v868 = vrot.slane %v854, %v867
    %v869 = vcombine.low %v836, %v852
    %v870 = vcombine.high %v836, %v852
    %v872 = vunpack.c.l.s4 1934713408
    %v873 = vunpack.c.0.s8 %v872
    %v874 = vlaneseq
    %v875 = vshrl.u32 %v874, 7
    %v876 = vsub.s32 %v873, %v875
    %v877 = vrot.slane %v869, %v876
    %v879 = vunpack.c.l.s4 1934713408
    %v880 = vunpack.c.0.s8 %v879
    %v881 = vlaneseq
    %v882 = vshrl.u32 %v881, 7
    %v883 = vsub.s32 %v880, %v882
    %v884 = vrot.slane %v870, %v883
    %v885 = vcombine.high %v861, 0.0
    %v886 = vcombine.high %v868, 0.0
    %v887 = vcombine.high %v877, 0.0
    %v888 = vcombine.high %v884, 0.0
    %v889 = vcombine.low %v184, %v812
    %v890 = vcombine.high %v184, %v812
    %v892 = vunpack.c.l.s4 1983009808
    %v893 = vunpack.c.0.s8 %v892
    %v894 = vlaneseq
    %v895 = vshrl.u32 %v894, 7
    %v896 = vsub.s32 %v893, %v895
    %v897 = vrot.slane %v889, %v896
    %v899 = vunpack.c.l.s4 1983009808
    %v900 = vunpack.c.0.s8 %v899
    %v901 = vlaneseq
    %v902 = vshrl.u32 %v901, 7
    %v903 = vsub.s32 %v900, %v902
    %v904 = vrot.slane %v890, %v903
    %v905 = vcombine.low %v806, %v818
    %v906 = vcombine.high %v806, %v818
    %v908 = vunpack.c.l.s4 1983009808
    %v909 = vunpack.c.0.s8 %v908
    %v910 = vlaneseq
    %v911 = vshrl.u32 %v910, 7
    %v912 = vsub.s32 %v909, %v911
    %v913 = vrot.slane %v905, %v912
    %v915 = vunpack.c.l.s4 1983009808
    %v916 = vunpack.c.0.s8 %v915
    %v917 = vlaneseq
    %v918 = vshrl.u32 %v917, 7
    %v919 = vsub.s32 %v916, %v918
    %v920 = vrot.slane %v906, %v919
    %v921 = vcombine.low %v897, %v913
    %v922 = vcombine.high %v897, %v913
    %v924 = vunpack.c.l.s4 1934713408
    %v925 = vunpack.c.0.s8 %v924
    %v926 = vlaneseq
    %v927 = vshrl.u32 %v926, 7
    %v928 = vsub.s32 %v925, %v927
    %v929 = vrot.slane %v921, %v928
    %v931 = vunpack.c.l.s4 1934713408
    %v932 = vunpack.c.0.s8 %v931
    %v933 = vlaneseq
    %v934 = vshrl.u32 %v933, 7
    %v935 = vsub.s32 %v932, %v934
    %v936 = vrot.slane %v922, %v935
    %v937 = vcombine.low %v904, %v920
    %v938 = vcombine.high %v904, %v920
    %v940 = vunpack.c.l.s4 1934713408
    %v941 = vunpack.c.0.s8 %v940
    %v942 = vlaneseq
    %v943 = vshrl.u32 %v942, 7
    %v944 = vsub.s32 %v941, %v943
    %v945 = vrot.slane %v937, %v944
    %v947 = vunpack.c.l.s4 1934713408
    %v948 = vunpack.c.0.s8 %v947
    %v949 = vlaneseq
    %v950 = vshrl.u32 %v949, 7
    %v951 = vsub.s32 %v948, %v950
    %v952 = vrot.slane %v938, %v951
    %v953 = vcombine.high %v929, 0.0
    %v954 = vcombine.high %v936, 0.0
    %v955 = vcombine.high %v945, 0.0
    %v956 = vcombine.high %v952, 0.0
    %v957 = vcombine.low %v861, %v868
    %v959 = vunpack.c.l.s4 1983009808
    %v960 = vunpack.c.0.s8 %v959
    %v961 = vlaneseq
    %v962 = vshrl.u32 %v961, 7
    %v963 = vsub.s32 %v960, %v962
    %v964 = vrot.slane %v957, %v963
    %v965 = vcombine.low %v885, %v886
    %v967 = vunpack.c.l.s4 1983009808
    %v968 = vunpack.c.0.s8 %v967
    %v969 = vlaneseq
    %v970 = vshrl.u32 %v969, 7
    %v971 = vsub.s32 %v968, %v970
    %v972 = vrot.slane %v965, %v971
    %v973 = vcombine.low %v877, %v884
    %v975 = vunpack.c.l.s4 1983009808
    %v976 = vunpack.c.0.s8 %v975
    %v977 = vlaneseq
    %v978 = vshrl.u32 %v977, 7
    %v979 = vsub.s32 %v976, %v978
    %v980 = vrot.slane %v973, %v979
    %v981 = vcombine.low %v887, %v888
    %v983 = vunpack.c.l.s4 1983009808
    %v984 = vunpack.c.0.s8 %v983
    %v985 = vlaneseq
    %v986 = vshrl.u32 %v985, 7
    %v987 = vsub.s32 %v984, %v986
    %v988 = vrot.slane %v981, %v987
    %v989 = vcombine.low %v964, %v972
    %v990 = vcombine.high %v964, %v972
    %v992 = vunpack.c.l.s4 1934713408
    %v993 = vunpack.c.0.s8 %v992
    %v994 = vlaneseq
    %v995 = vshrl.u32 %v994, 7
    %v996 = vsub.s32 %v993, %v995
    %v997 = vrot.slane %v989, %v996
    %v999 = vunpack.c.l.s4 1934713408
    %v1000 = vunpack.c.0.s8 %v999
    %v1001 = vlaneseq
    %v1002 = vshrl.u32 %v1001, 7
    %v1003 = vsub.s32 %v1000, %v1002
    %v1004 = vrot.slane %v990, %v1003
    %v1005 = vcombine.low %v980, %v988
    %v1006 = vcombine.high %v980, %v988
    %v1008 = vunpack.c.l.s4 1934713408
    %v1009 = vunpack.c.0.s8 %v1008
    %v1010 = vlaneseq
    %v1011 = vshrl.u32 %v1010, 7
    %v1012 = vsub.s32 %v1009, %v1011
    %v1013 = vrot.slane %v1005, %v1012
    %v1015 = vunpack.c.l.s4 1934713408
    %v1016 = vunpack.c.0.s8 %v1015
    %v1017 = vlaneseq
    %v1018 = vshrl.u32 %v1017, 7
    %v1019 = vsub.s32 %v1016, %v1018
    %v1020 = vrot.slane %v1006, %v1019
    %v1021 = vcombine.low %v997, %v1013
    %v1022 = vcombine.high %v997, %v1013
    %v1023 = vcombine.low %v1004, %v1020
    %v1024 = vcombine.high %v1004, %v1020
    %v1025 = vcombine.low %v929, %v936
    %v1027 = vunpack.c.l.s4 1983009808
    %v1028 = vunpack.c.0.s8 %v1027
    %v1029 = vlaneseq
    %v1030 = vshrl.u32 %v1029, 7
    %v1031 = vsub.s32 %v1028, %v1030
    %v1032 = vrot.slane %v1025, %v1031
    %v1033 = vcombine.low %v953, %v954
    %v1035 = vunpack.c.l.s4 1983009808
    %v1036 = vunpack.c.0.s8 %v1035
    %v1037 = vlaneseq
    %v1038 = vshrl.u32 %v1037, 7
    %v1039 = vsub.s32 %v1036, %v1038
    %v1040 = vrot.slane %v1033, %v1039
    %v1041 = vcombine.low %v945, %v952
    %v1043 = vunpack.c.l.s4 1983009808
    %v1044 = vunpack.c.0.s8 %v1043
    %v1045 = vlaneseq
    %v1046 = vshrl.u32 %v1045, 7
    %v1047 = vsub.s32 %v1044, %v1046
    %v1048 = vrot.slane %v1041, %v1047
    %v1049 = vcombine.low %v955, %v956
    %v1051 = vunpack.c.l.s4 1983009808
    %v1052 = vunpack.c.0.s8 %v1051
    %v1053 = vlaneseq
    %v1054 = vshrl.u32 %v1053, 7
    %v1055 = vsub.s32 %v1052, %v1054
    %v1056 = vrot.slane %v1049, %v1055
    %v1057 = vcombine.low %v1032, %v1040
    %v1058 = vcombine.high %v1032, %v1040
    %v1060 = vunpack.c.l.s4 1934713408
    %v1061 = vunpack.c.0.s8 %v1060
    %v1062 = vlaneseq
    %v1063 = vshrl.u32 %v1062, 7
    %v1064 = vsub.s32 %v1061, %v1063
    %v1065 = vrot.slane %v1057, %v1064
    %v1067 = vunpack.c.l.s4 1934713408
    %v1068 = vunpack.c.0.s8 %v1067
    %v1069 = vlaneseq
    %v1070 = vshrl.u32 %v1069, 7
    %v1071 = vsub.s32 %v1068, %v1070
    %v1072 = vrot.slane %v1058, %v1071
    %v1073 = vcombine.low %v1048, %v1056
    %v1074 = vcombine.high %v1048, %v1056
    %v1076 = vunpack.c.l.s4 1934713408
    %v1077 = vunpack.c.0.s8 %v1076
    %v1078 = vlaneseq
    %v1079 = vshrl.u32 %v1078, 7
    %v1080 = vsub.s32 %v1077, %v1079
    %v1081 = vrot.slane %v1073, %v1080
    %v1083 = vunpack.c.l.s4 1934713408
    %v1084 = vunpack.c.0.s8 %v1083
    %v1085 = vlaneseq
    %v1086 = vshrl.u32 %v1085, 7
    %v1087 = vsub.s32 %v1084, %v1086
    %v1088 = vrot.slane %v1074, %v1087
    %v1089 = vcombine.low %v1065, %v1081
    %v1090 = vcombine.high %v1065, %v1081
    %v1091 = vcombine.low %v1072, %v1088
    %v1092 = vcombine.high %v1072, %v1088
    %v1093 = vld [vmem:[#allocation8] sm:$0xff]
    %v1094 = vld [vmem:[#allocation8 + $0x8] sm:$0xff]
    %vm1095 = vcmask 64512
    %v1097 = vsel %vm1095, %v657, 0
    %v1100 = vsel %vm1095, %v793, 0
    %v1103 = vsel %vm1095, %v661, 0
    %v1106 = vsel %vm1095, %v797, 0
    %1108 = vmatprep.subr.mxu0 0.0
    %1109 = vmatpush1.xpose.msra.mxu0 %v1103
    %1110 = vmatprep.subr.mxu0 0.0
    %1111 = vmatpush1.xpose.msra.mxu0 %v1106
    %1112 = vmatprep.subr.mxu0 0.0
    %1113 = vmatpush1.xpose.msra.mxu0 0.0
    %1114 = vmatprep.subr.mxu0 0.0
    %1115 = vmatpush1.xpose.msra.mxu0 0.0
    %1116 = vmatprep.subr.mxu0 0.0
    %1117 = vmatpush1.xpose.msra.mxu0 0.0
    %1118 = vmatprep.subr.mxu0 0.0
    %1119 = vmatpush1.xpose.msra.mxu0 0.0
    %1120 = vmatprep.subr.mxu0 0.0
    %1121 = vmatpush1.xpose.msra.mxu0 0.0
    %1122 = vmatprep.subr.mxu0 0.0
    %1123 = vmatpush1.xpose.msra.mxu0 0.0
    %1124 = vmatprep.subr.mxu0 0.0
    %1125 = vmatpush1.xpose.msra.mxu0 0.0
    %1126 = vmatprep.subr.mxu0 0.0
    %1127 = vmatpush1.xpose.msra.mxu0 0.0
    %1128 = vmatprep.subr.mxu0 0.0
    %1129 = vmatpush1.xpose.msra.mxu0 0.0
    %1130 = vmatprep.subr.mxu0 0.0
    %1131 = vmatpush1.xpose.msra.mxu0 0.0
    %1132 = vmatprep.subr.mxu0 0.0
    %1133 = vmatpush1.xpose.msra.mxu0 0.0
    %1134 = vmatprep.subr.mxu0 0.0
    %1135 = vmatpush1.xpose.msra.mxu0 0.0
    %1136 = vmatprep.subr.mxu0 0.0
    %1137 = vmatpush1.xpose.msra.mxu0 0.0
    %1138 = vmatprep.subr.mxu0 0.0
    %1139 = vmatpush1.xpose.msra.mxu0 0.0
    %1140 = vmatprep.subr.mxu0 0.0
    %1141 = vmatpush1.xpose.msra.mxu0 0.0
    %1142 = vmatprep.subr.mxu0 0.0
    %1143 = vmatpush1.xpose.msra.mxu0 0.0
    %1144 = vmatprep.subr.mxu0 0.0
    %1145 = vmatpush1.xpose.msra.mxu0 0.0
    %1146 = vmatprep.subr.mxu0 0.0
    %1147 = vmatpush1.xpose.msra.mxu0 0.0
    %1148 = vmatprep.subr.mxu0 0.0
    %1149 = vmatpush1.xpose.msra.mxu0 0.0
    %1150 = vmatprep.subr.mxu0 0.0
    %1151 = vmatpush1.xpose.msra.mxu0 0.0
    %1152 = vmatprep.subr.mxu0 0.0
    %1153 = vmatpush1.xpose.msra.mxu0 0.0
    %1154 = vmatprep.subr.mxu0 0.0
    %1155 = vmatpush1.xpose.msra.mxu0 0.0
    %1156 = vmatprep.subr.mxu0 0.0
    %1157 = vmatpush1.xpose.msra.mxu0 0.0
    %1158 = vmatprep.subr.mxu0 0.0
    %1159 = vmatpush1.xpose.msra.mxu0 0.0
    %1160 = vmatprep.subr.mxu0 0.0
    %1161 = vmatpush1.xpose.msra.mxu0 0.0
    %1162 = vmatprep.subr.mxu0 0.0
    %1163 = vmatpush1.xpose.msra.mxu0 0.0
    %1164 = vmatprep.subr.mxu0 0.0
    %1165 = vmatpush1.xpose.msra.mxu0 0.0
    %1166 = vmatprep.subr.mxu0 0.0
    %1167 = vmatpush1.xpose.msra.mxu0 0.0
    %1168 = vmatprep.subr.mxu0 0.0
    %1169 = vmatpush1.xpose.msra.mxu0 0.0
    %1170 = vmatprep.subr.mxu0 0.0
    %1171 = vmatpush1.xpose.msra.mxu0 0.0
    %1172 = vmatprep.mubr.f32.mxu0 0.0
    %1173 = vmatmul.mubr.f32.gmra.mrb[0].mxu0 %v1097
    %v1174 = vpop.f32.mrb[0].mxu0
    %v1175 = vadd.f32 %v1093, %v1174
    %v1176 = vpop.f32.mrb[0].mxu0
    %1177 = vmatprep.mubr.f32.mxu0 0.0
    %1178 = vmatmul.mubr.f32.gmra.mrb[0].mxu0 %v1100
    %v1179 = vpop.f32.mrb[0].mxu0
    %v1180 = vadd.f32 %v1094, %v1179
    %v1181 = vpop.f32.mrb[0].mxu0
    %1182 = vdwg.mxu0
    %v1184 = vsel %vm1095, %v658, 0
    %v1187 = vsel %vm1095, %v794, 0
    %v1190 = vsel %vm1095, %v662, 0
    %v1193 = vsel %vm1095, %v798, 0
    %1195 = vmatprep.subr.mxu0 0.0
    %1196 = vmatpush1.xpose.msra.mxu0 %v1190
    %1197 = vmatprep.subr.mxu0 0.0
    %1198 = vmatpush1.xpose.msra.mxu0 %v1193
    %1199 = vmatprep.subr.mxu0 0.0
    %1200 = vmatpush1.xpose.msra.mxu0 0.0
    %1201 = vmatprep.subr.mxu0 0.0
    %1202 = vmatpush1.xpose.msra.mxu0 0.0
    %1203 = vmatprep.subr.mxu0 0.0
    %1204 = vmatpush1.xpose.msra.mxu0 0.0
    %1205 = vmatprep.subr.mxu0 0.0
    %1206 = vmatpush1.xpose.msra.mxu0 0.0
    %1207 = vmatprep.subr.mxu0 0.0
    %1208 = vmatpush1.xpose.msra.mxu0 0.0
    %1209 = vmatprep.subr.mxu0 0.0
    %1210 = vmatpush1.xpose.msra.mxu0 0.0
    %1211 = vmatprep.subr.mxu0 0.0
    %1212 = vmatpush1.xpose.msra.mxu0 0.0
    %1213 = vmatprep.subr.mxu0 0.0
    %1214 = vmatpush1.xpose.msra.mxu0 0.0
    %1215 = vmatprep.subr.mxu0 0.0
    %1216 = vmatpush1.xpose.msra.mxu0 0.0
    %1217 = vmatprep.subr.mxu0 0.0
    %1218 = vmatpush1.xpose.msra.mxu0 0.0
    %1219 = vmatprep.subr.mxu0 0.0
    %1220 = vmatpush1.xpose.msra.mxu0 0.0
    %1221 = vmatprep.subr.mxu0 0.0
    %1222 = vmatpush1.xpose.msra.mxu0 0.0
    %1223 = vmatprep.subr.mxu0 0.0
    %1224 = vmatpush1.xpose.msra.mxu0 0.0
    %1225 = vmatprep.subr.mxu0 0.0
    %1226 = vmatpush1.xpose.msra.mxu0 0.0
    %1227 = vmatprep.subr.mxu0 0.0
    %1228 = vmatpush1.xpose.msra.mxu0 0.0
    %1229 = vmatprep.subr.mxu0 0.0
    %1230 = vmatpush1.xpose.msra.mxu0 0.0
    %1231 = vmatprep.subr.mxu0 0.0
    %1232 = vmatpush1.xpose.msra.mxu0 0.0
    %1233 = vmatprep.subr.mxu0 0.0
    %1234 = vmatpush1.xpose.msra.mxu0 0.0
    %1235 = vmatprep.subr.mxu0 0.0
    %1236 = vmatpush1.xpose.msra.mxu0 0.0
    %1237 = vmatprep.subr.mxu0 0.0
    %1238 = vmatpush1.xpose.msra.mxu0 0.0
    %1239 = vmatprep.subr.mxu0 0.0
    %1240 = vmatpush1.xpose.msra.mxu0 0.0
    %1241 = vmatprep.subr.mxu0 0.0
    %1242 = vmatpush1.xpose.msra.mxu0 0.0
    %1243 = vmatprep.subr.mxu0 0.0
    %1244 = vmatpush1.xpose.msra.mxu0 0.0
    %1245 = vmatprep.subr.mxu0 0.0
    %1246 = vmatpush1.xpose.msra.mxu0 0.0
    %1247 = vmatprep.subr.mxu0 0.0
    %1248 = vmatpush1.xpose.msra.mxu0 0.0
    %1249 = vmatprep.subr.mxu0 0.0
    %1250 = vmatpush1.xpose.msra.mxu0 0.0
    %1251 = vmatprep.subr.mxu0 0.0
    %1252 = vmatpush1.xpose.msra.mxu0 0.0
    %1253 = vmatprep.subr.mxu0 0.0
    %1254 = vmatpush1.xpose.msra.mxu0 0.0
    %1255 = vmatprep.subr.mxu0 0.0
    %1256 = vmatpush1.xpose.msra.mxu0 0.0
    %1257 = vmatprep.subr.mxu0 0.0
    %1258 = vmatpush1.xpose.msra.mxu0 0.0
    %1259 = vmatprep.mubr.f32.mxu0 0.0
    %1260 = vmatmul.mubr.f32.gmra.mrb[0].mxu0 %v1184
    %v1261 = vpop.f32.mrb[0].mxu0
    %v1262 = vadd.f32 %v1093, %v1261
    %v1263 = vpop.f32.mrb[0].mxu0
    %1264 = vmatprep.mubr.f32.mxu0 0.0
    %1265 = vmatmul.mubr.f32.gmra.mrb[0].mxu0 %v1187
    %v1266 = vpop.f32.mrb[0].mxu0
    %v1267 = vadd.f32 %v1094, %v1266
    %v1268 = vpop.f32.mrb[0].mxu0
    %1269 = vdwg.mxu0
    %v1271 = vsel %vm1095, %v659, 0
    %v1274 = vsel %vm1095, %v795, 0
    %v1277 = vsel %vm1095, %v663, 0
    %v1280 = vsel %vm1095, %v799, 0
    %1282 = vmatprep.subr.mxu0 0.0
    %1283 = vmatpush1.xpose.msra.mxu0 %v1277
    %1284 = vmatprep.subr.mxu0 0.0
    %1285 = vmatpush1.xpose.msra.mxu0 %v1280
    %1286 = vmatprep.subr.mxu0 0.0
    %1287 = vmatpush1.xpose.msra.mxu0 0.0
    %1288 = vmatprep.subr.mxu0 0.0
    %1289 = vmatpush1.xpose.msra.mxu0 0.0
    %1290 = vmatprep.subr.mxu0 0.0
    %1291 = vmatpush1.xpose.msra.mxu0 0.0
    %1292 = vmatprep.subr.mxu0 0.0
    %1293 = vmatpush1.xpose.msra.mxu0 0.0
    %1294 = vmatprep.subr.mxu0 0.0
    %1295 = vmatpush1.xpose.msra.mxu0 0.0
    %1296 = vmatprep.subr.mxu0 0.0
    %1297 = vmatpush1.xpose.msra.mxu0 0.0
    %1298 = vmatprep.subr.mxu0 0.0
    %1299 = vmatpush1.xpose.msra.mxu0 0.0
    %1300 = vmatprep.subr.mxu0 0.0
    %1301 = vmatpush1.xpose.msra.mxu0 0.0
    %1302 = vmatprep.subr.mxu0 0.0
    %1303 = vmatpush1.xpose.msra.mxu0 0.0
    %1304 = vmatprep.subr.mxu0 0.0
    %1305 = vmatpush1.xpose.msra.mxu0 0.0
    %1306 = vmatprep.subr.mxu0 0.0
    %1307 = vmatpush1.xpose.msra.mxu0 0.0
    %1308 = vmatprep.subr.mxu0 0.0
    %1309 = vmatpush1.xpose.msra.mxu0 0.0
    %1310 = vmatprep.subr.mxu0 0.0
    %1311 = vmatpush1.xpose.msra.mxu0 0.0
    %1312 = vmatprep.subr.mxu0 0.0
    %1313 = vmatpush1.xpose.msra.mxu0 0.0
    %1314 = vmatprep.subr.mxu0 0.0
    %1315 = vmatpush1.xpose.msra.mxu0 0.0
    %1316 = vmatprep.subr.mxu0 0.0
    %1317 = vmatpush1.xpose.msra.mxu0 0.0
    %1318 = vmatprep.subr.mxu0 0.0
    %1319 = vmatpush1.xpose.msra.mxu0 0.0
    %1320 = vmatprep.subr.mxu0 0.0
    %1321 = vmatpush1.xpose.msra.mxu0 0.0
    %1322 = vmatprep.subr.mxu0 0.0
    %1323 = vmatpush1.xpose.msra.mxu0 0.0
    %1324 = vmatprep.subr.mxu0 0.0
    %1325 = vmatpush1.xpose.msra.mxu0 0.0
    %1326 = vmatprep.subr.mxu0 0.0
    %1327 = vmatpush1.xpose.msra.mxu0 0.0
    %1328 = vmatprep.subr.mxu0 0.0
    %1329 = vmatpush1.xpose.msra.mxu0 0.0
    %1330 = vmatprep.subr.mxu0 0.0
    %1331 = vmatpush1.xpose.msra.mxu0 0.0
    %1332 = vmatprep.subr.mxu0 0.0
    %1333 = vmatpush1.xpose.msra.mxu0 0.0
    %1334 = vmatprep.subr.mxu0 0.0
    %1335 = vmatpush1.xpose.msra.mxu0 0.0
    %1336 = vmatprep.subr.mxu0 0.0
    %1337 = vmatpush1.xpose.msra.mxu0 0.0
    %1338 = vmatprep.subr.mxu0 0.0
    %1339 = vmatpush1.xpose.msra.mxu0 0.0
    %1340 = vmatprep.subr.mxu0 0.0
    %1341 = vmatpush1.xpose.msra.mxu0 0.0
    %1342 = vmatprep.subr.mxu0 0.0
    %1343 = vmatpush1.xpose.msra.mxu0 0.0
    %1344 = vmatprep.subr.mxu0 0.0
    %1345 = vmatpush1.xpose.msra.mxu0 0.0
    %1346 = vmatprep.mubr.f32.mxu0 0.0
    %1347 = vmatmul.mubr.f32.gmra.mrb[0].mxu0 %v1271
    %v1348 = vpop.f32.mrb[0].mxu0
    %v1349 = vadd.f32 %v1093, %v1348
    %v1350 = vpop.f32.mrb[0].mxu0
    %1351 = vmatprep.mubr.f32.mxu0 0.0
    %1352 = vmatmul.mubr.f32.gmra.mrb[0].mxu0 %v1274
    %v1353 = vpop.f32.mrb[0].mxu0
    %v1354 = vadd.f32 %v1094, %v1353
    %v1355 = vpop.f32.mrb[0].mxu0
    %1356 = vdwg.mxu0
    %v1358 = vsel %vm1095, %v660, 0
    %v1361 = vsel %vm1095, %v796, 0
    %v1364 = vsel %vm1095, %v664, 0
    %v1367 = vsel %vm1095, %v800, 0
    %1369 = vmatprep.subr.mxu0 0.0
    %1370 = vmatpush1.xpose.msra.mxu0 %v1364
    %1371 = vmatprep.subr.mxu0 0.0
    %1372 = vmatpush1.xpose.msra.mxu0 %v1367
    %1373 = vmatprep.subr.mxu0 0.0
    %1374 = vmatpush1.xpose.msra.mxu0 0.0
    %1375 = vmatprep.subr.mxu0 0.0
    %1376 = vmatpush1.xpose.msra.mxu0 0.0
    %1377 = vmatprep.subr.mxu0 0.0
    %1378 = vmatpush1.xpose.msra.mxu0 0.0
    %1379 = vmatprep.subr.mxu0 0.0
    %1380 = vmatpush1.xpose.msra.mxu0 0.0
    %1381 = vmatprep.subr.mxu0 0.0
    %1382 = vmatpush1.xpose.msra.mxu0 0.0
    %1383 = vmatprep.subr.mxu0 0.0
    %1384 = vmatpush1.xpose.msra.mxu0 0.0
    %1385 = vmatprep.subr.mxu0 0.0
    %1386 = vmatpush1.xpose.msra.mxu0 0.0
    %1387 = vmatprep.subr.mxu0 0.0
    %1388 = vmatpush1.xpose.msra.mxu0 0.0
    %1389 = vmatprep.subr.mxu0 0.0
    %1390 = vmatpush1.xpose.msra.mxu0 0.0
    %1391 = vmatprep.subr.mxu0 0.0
    %1392 = vmatpush1.xpose.msra.mxu0 0.0
    %1393 = vmatprep.subr.mxu0 0.0
    %1394 = vmatpush1.xpose.msra.mxu0 0.0
    %1395 = vmatprep.subr.mxu0 0.0
    %1396 = vmatpush1.xpose.msra.mxu0 0.0
    %1397 = vmatprep.subr.mxu0 0.0
    %1398 = vmatpush1.xpose.msra.mxu0 0.0
    %1399 = vmatprep.subr.mxu0 0.0
    %1400 = vmatpush1.xpose.msra.mxu0 0.0
    %1401 = vmatprep.subr.mxu0 0.0
    %1402 = vmatpush1.xpose.msra.mxu0 0.0
    %1403 = vmatprep.subr.mxu0 0.0
    %1404 = vmatpush1.xpose.msra.mxu0 0.0
    %1405 = vmatprep.subr.mxu0 0.0
    %1406 = vmatpush1.xpose.msra.mxu0 0.0
    %1407 = vmatprep.subr.mxu0 0.0
    %1408 = vmatpush1.xpose.msra.mxu0 0.0
    %1409 = vmatprep.subr.mxu0 0.0
    %1410 = vmatpush1.xpose.msra.mxu0 0.0
    %1411 = vmatprep.subr.mxu0 0.0
    %1412 = vmatpush1.xpose.msra.mxu0 0.0
    %1413 = vmatprep.subr.mxu0 0.0
    %1414 = vmatpush1.xpose.msra.mxu0 0.0
    %1415 = vmatprep.subr.mxu0 0.0
    %1416 = vmatpush1.xpose.msra.mxu0 0.0
    %1417 = vmatprep.subr.mxu0 0.0
    %1418 = vmatpush1.xpose.msra.mxu0 0.0
    %1419 = vmatprep.subr.mxu0 0.0
    %1420 = vmatpush1.xpose.msra.mxu0 0.0
    %1421 = vmatprep.subr.mxu0 0.0
    %1422 = vmatpush1.xpose.msra.mxu0 0.0
    %1423 = vmatprep.subr.mxu0 0.0
    %1424 = vmatpush1.xpose.msra.mxu0 0.0
    %1425 = vmatprep.subr.mxu0 0.0
    %1426 = vmatpush1.xpose.msra.mxu0 0.0
    %1427 = vmatprep.subr.mxu0 0.0
    %1428 = vmatpush1.xpose.msra.mxu0 0.0
    %1429 = vmatprep.subr.mxu0 0.0
    %1430 = vmatpush1.xpose.msra.mxu0 0.0
    %1431 = vmatprep.subr.mxu0 0.0
    %1432 = vmatpush1.xpose.msra.mxu0 0.0
    %1433 = vmatprep.mubr.f32.mxu0 0.0
    %1434 = vmatmul.mubr.f32.gmra.mrb[0].mxu0 %v1358
    %v1435 = vpop.f32.mrb[0].mxu0
    %v1436 = vadd.f32 %v1093, %v1435
    %v1437 = vpop.f32.mrb[0].mxu0
    %1438 = vmatprep.mubr.f32.mxu0 0.0
    %1439 = vmatmul.mubr.f32.gmra.mrb[0].mxu0 %v1361
    %v1440 = vpop.f32.mrb[0].mxu0
    %v1441 = vadd.f32 %v1094, %v1440
    %v1442 = vpop.f32.mrb[0].mxu0
    %1443 = vdwg.mxu0
    %vm1444 = vcmask 130048
    %v1445 = vsel %vm1444, %v1175, -inf
    %1446 = vmax.xlane.f32.xlu0 %v1445
    %v1447 = vpop.xlane.xlu0 %1446
    %v1448 = vsel %vm1444, %v1180, -inf
    %1449 = vmax.xlane.f32.xlu0 %v1448
    %v1450 = vpop.xlane.xlu0 %1449
    %v1451 = vsel %vm1444, %v1262, -inf
    %1452 = vmax.xlane.f32.xlu0 %v1451
    %v1453 = vpop.xlane.xlu0 %1452
    %v1454 = vsel %vm1444, %v1267, -inf
    %1455 = vmax.xlane.f32.xlu0 %v1454
    %v1456 = vpop.xlane.xlu0 %1455
    %v1457 = vsel %vm1444, %v1349, -inf
    %1458 = vmax.xlane.f32.xlu0 %v1457
    %v1459 = vpop.xlane.xlu0 %1458
    %v1460 = vsel %vm1444, %v1354, -inf
    %1461 = vmax.xlane.f32.xlu0 %v1460
    %v1462 = vpop.xlane.xlu0 %1461
    %v1463 = vsel %vm1444, %v1436, -inf
    %1464 = vmax.xlane.f32.xlu0 %v1463
    %v1465 = vpop.xlane.xlu0 %1464
    %v1466 = vsel %vm1444, %v1441, -inf
    %1467 = vmax.xlane.f32.xlu0 %v1466
    %v1468 = vpop.xlane.xlu0 %1467
    %v1469 = vsub.f32 %v1175, %v1447
    %v1470 = vsub.f32 %v1180, %v1450
    %v1471 = vsub.f32 %v1262, %v1453
    %v1472 = vsub.f32 %v1267, %v1456
    %v1473 = vsub.f32 %v1349, %v1459
    %v1474 = vsub.f32 %v1354, %v1462
    %v1475 = vsub.f32 %v1436, %v1465
    %v1476 = vsub.f32 %v1441, %v1468
    %v1477 = vmul.f32 %v1469, 1.442695
    %v1478 = vpow.pop %v1477
    %v1479 = vmul.f32 %v1470, 1.442695
    %v1480 = vpow.pop %v1479
    %v1481 = vmul.f32 %v1471, 1.442695
    %v1482 = vpow.pop %v1481
    %v1483 = vmul.f32 %v1472, 1.442695
    %v1484 = vpow.pop %v1483
    %v1485 = vmul.f32 %v1473, 1.442695
    %v1486 = vpow.pop %v1485
    %v1487 = vmul.f32 %v1474, 1.442695
    %v1488 = vpow.pop %v1487
    %v1489 = vmul.f32 %v1475, 1.442695
    %v1490 = vpow.pop %v1489
    %v1491 = vmul.f32 %v1476, 1.442695
    %v1492 = vpow.pop %v1491
    %v1493 = vsel %vm1444, %v1478, 0.0
    %1494 = vadd.xlane.f32.xlu0 %v1493
    %v1495 = vpop.xlane.xlu0 %1494
    %v1496 = vsel %vm1444, %v1480, 0.0
    %1497 = vadd.xlane.f32.xlu0 %v1496
    %v1498 = vpop.xlane.xlu0 %1497
    %v1499 = vsel %vm1444, %v1482, 0.0
    %1500 = vadd.xlane.f32.xlu0 %v1499
    %v1501 = vpop.xlane.xlu0 %1500
    %v1502 = vsel %vm1444, %v1484, 0.0
    %1503 = vadd.xlane.f32.xlu0 %v1502
    %v1504 = vpop.xlane.xlu0 %1503
    %v1505 = vsel %vm1444, %v1486, 0.0
    %1506 = vadd.xlane.f32.xlu0 %v1505
    %v1507 = vpop.xlane.xlu0 %1506
    %v1508 = vsel %vm1444, %v1488, 0.0
    %1509 = vadd.xlane.f32.xlu0 %v1508
    %v1510 = vpop.xlane.xlu0 %1509
    %v1511 = vsel %vm1444, %v1490, 0.0
    %1512 = vadd.xlane.f32.xlu0 %v1511
    %v1513 = vpop.xlane.xlu0 %1512
    %v1514 = vsel %vm1444, %v1492, 0.0
    %1515 = vadd.xlane.f32.xlu0 %v1514
    %v1516 = vpop.xlane.xlu0 %1515
    %v1517 = vrcp.pop %v1495
    %v1518 = vrcp.pop %v1498
    %v1519 = vrcp.pop %v1501
    %v1520 = vrcp.pop %v1504
    %v1521 = vrcp.pop %v1507
    %v1522 = vrcp.pop %v1510
    %v1523 = vrcp.pop %v1513
    %v1524 = vrcp.pop %v1516
    %v1525 = vmul.f32 %v1478, %v1517
    %v1526 = vmul.f32 %v1480, %v1518
    %v1527 = vmul.f32 %v1482, %v1519
    %v1528 = vmul.f32 %v1484, %v1520
    %v1529 = vmul.f32 %v1486, %v1521
    %v1530 = vmul.f32 %v1488, %v1522
    %v1531 = vmul.f32 %v1490, %v1523
    %v1532 = vmul.f32 %v1492, %v1524
    %v1534 = vsel %vm1444, %v1525, 0
    %v1537 = vsel %vm1444, %v1526, 0
    %1539 = vmatprep.subr.mxu0 0.0
    %1540 = vmatpush1.msra.mxu0 %v1021
    %1541 = vmatprep.subr.mxu0 0.0
    %1542 = vmatpush1.msra.mxu0 %v1089
    %1543 = vmatprep.subr.mxu0 0.0
    %1544 = vmatpush1.msra.mxu0 0.0
    %1545 = vmatprep.subr.mxu0 0.0
    %1546 = vmatpush1.msra.mxu0 0.0
    %1547 = vmatprep.subr.mxu0 0.0
    %1548 = vmatpush1.msra.mxu0 0.0
    %1549 = vmatprep.subr.mxu0 0.0
    %1550 = vmatpush1.msra.mxu0 0.0
    %1551 = vmatprep.subr.mxu0 0.0
    %1552 = vmatpush1.msra.mxu0 0.0
    %1553 = vmatprep.subr.mxu0 0.0
    %1554 = vmatpush1.msra.mxu0 0.0
    %1555 = vmatprep.subr.mxu0 0.0
    %1556 = vmatpush1.msra.mxu0 0.0
    %1557 = vmatprep.subr.mxu0 0.0
    %1558 = vmatpush1.msra.mxu0 0.0
    %1559 = vmatprep.subr.mxu0 0.0
    %1560 = vmatpush1.msra.mxu0 0.0
    %1561 = vmatprep.subr.mxu0 0.0
    %1562 = vmatpush1.msra.mxu0 0.0
    %1563 = vmatprep.subr.mxu0 0.0
    %1564 = vmatpush1.msra.mxu0 0.0
    %1565 = vmatprep.subr.mxu0 0.0
    %1566 = vmatpush1.msra.mxu0 0.0
    %1567 = vmatprep.subr.mxu0 0.0
    %1568 = vmatpush1.msra.mxu0 0.0
    %1569 = vmatprep.subr.mxu0 0.0
    %1570 = vmatpush1.msra.mxu0 0.0
    %1571 = vmatprep.subr.mxu0 0.0
    %1572 = vmatpush1.msra.mxu0 0.0
    %1573 = vmatprep.subr.mxu0 0.0
    %1574 = vmatpush1.msra.mxu0 0.0
    %1575 = vmatprep.subr.mxu0 0.0
    %1576 = vmatpush1.msra.mxu0 0.0
    %1577 = vmatprep.subr.mxu0 0.0
    %1578 = vmatpush1.msra.mxu0 0.0
    %1579 = vmatprep.subr.mxu0 0.0
    %1580 = vmatpush1.msra.mxu0 0.0
    %1581 = vmatprep.subr.mxu0 0.0
    %1582 = vmatpush1.msra.mxu0 0.0
    %1583 = vmatprep.subr.mxu0 0.0
    %1584 = vmatpush1.msra.mxu0 0.0
    %1585 = vmatprep.subr.mxu0 0.0
    %1586 = vmatpush1.msra.mxu0 0.0
    %1587 = vmatprep.subr.mxu0 0.0
    %1588 = vmatpush1.msra.mxu0 0.0
    %1589 = vmatprep.subr.mxu0 0.0
    %1590 = vmatpush1.msra.mxu0 0.0
    %1591 = vmatprep.subr.mxu0 0.0
    %1592 = vmatpush1.msra.mxu0 0.0
    %1593 = vmatprep.subr.mxu0 0.0
    %1594 = vmatpush1.msra.mxu0 0.0
    %1595 = vmatprep.subr.mxu0 0.0
    %1596 = vmatpush1.msra.mxu0 0.0
    %1597 = vmatprep.subr.mxu0 0.0
    %1598 = vmatpush1.msra.mxu0 0.0
    %1599 = vmatprep.subr.mxu0 0.0
    %1600 = vmatpush1.msra.mxu0 0.0
    %1601 = vmatprep.subr.mxu0 0.0
    %1602 = vmatpush1.msra.mxu0 0.0
    %1603 = vmatprep.mubr.f32.mxu0 0.0
    %1604 = vmatmul.mubr.f32.gmra.mrb[0].mxu0 %v1534
    %v1605 = vpop.f32.mrb[0].mxu0
    %v1606 = vadd.f32 0.0, %v1605
    %v1607 = vpop.f32.mrb[0].mxu0
    %1608 = vmatprep.mubr.f32.mxu0 0.0
    %1609 = vmatmul.mubr.f32.gmra.mrb[0].mxu0 %v1537
    %v1610 = vpop.f32.mrb[0].mxu0
    %v1611 = vadd.f32 0.0, %v1610
    %v1612 = vpop.f32.mrb[0].mxu0
    %1613 = vdwg.mxu0
    %v1615 = vsel %vm1444, %v1527, 0
    %v1618 = vsel %vm1444, %v1528, 0
    %1620 = vmatprep.subr.mxu0 0.0
    %1621 = vmatpush1.msra.mxu0 %v1022
    %1622 = vmatprep.subr.mxu0 0.0
    %1623 = vmatpush1.msra.mxu0 %v1090
    %1624 = vmatprep.subr.mxu0 0.0
    %1625 = vmatpush1.msra.mxu0 0.0
    %1626 = vmatprep.subr.mxu0 0.0
    %1627 = vmatpush1.msra.mxu0 0.0
    %1628 = vmatprep.subr.mxu0 0.0
    %1629 = vmatpush1.msra.mxu0 0.0
    %1630 = vmatprep.subr.mxu0 0.0
    %1631 = vmatpush1.msra.mxu0 0.0
    %1632 = vmatprep.subr.mxu0 0.0
    %1633 = vmatpush1.msra.mxu0 0.0
    %1634 = vmatprep.subr.mxu0 0.0
    %1635 = vmatpush1.msra.mxu0 0.0
    %1636 = vmatprep.subr.mxu0 0.0
    %1637 = vmatpush1.msra.mxu0 0.0
    %1638 = vmatprep.subr.mxu0 0.0
    %1639 = vmatpush1.msra.mxu0 0.0
    %1640 = vmatprep.subr.mxu0 0.0
    %1641 = vmatpush1.msra.mxu0 0.0
    %1642 = vmatprep.subr.mxu0 0.0
    %1643 = vmatpush1.msra.mxu0 0.0
    %1644 = vmatprep.subr.mxu0 0.0
    %1645 = vmatpush1.msra.mxu0 0.0
    %1646 = vmatprep.subr.mxu0 0.0
    %1647 = vmatpush1.msra.mxu0 0.0
    %1648 = vmatprep.subr.mxu0 0.0
    %1649 = vmatpush1.msra.mxu0 0.0
    %1650 = vmatprep.subr.mxu0 0.0
    %1651 = vmatpush1.msra.mxu0 0.0
    %1652 = vmatprep.subr.mxu0 0.0
    %1653 = vmatpush1.msra.mxu0 0.0
    %1654 = vmatprep.subr.mxu0 0.0
    %1655 = vmatpush1.msra.mxu0 0.0
    %1656 = vmatprep.subr.mxu0 0.0
    %1657 = vmatpush1.msra.mxu0 0.0
    %1658 = vmatprep.subr.mxu0 0.0
    %1659 = vmatpush1.msra.mxu0 0.0
    %1660 = vmatprep.subr.mxu0 0.0
    %1661 = vmatpush1.msra.mxu0 0.0
    %1662 = vmatprep.subr.mxu0 0.0
    %1663 = vmatpush1.msra.mxu0 0.0
    %1664 = vmatprep.subr.mxu0 0.0
    %1665 = vmatpush1.msra.mxu0 0.0
    %1666 = vmatprep.subr.mxu0 0.0
    %1667 = vmatpush1.msra.mxu0 0.0
    %1668 = vmatprep.subr.mxu0 0.0
    %1669 = vmatpush1.msra.mxu0 0.0
    %1670 = vmatprep.subr.mxu0 0.0
    %1671 = vmatpush1.msra.mxu0 0.0
    %1672 = vmatprep.subr.mxu0 0.0
    %1673 = vmatpush1.msra.mxu0 0.0
    %1674 = vmatprep.subr.mxu0 0.0
    %1675 = vmatpush1.msra.mxu0 0.0
    %1676 = vmatprep.subr.mxu0 0.0
    %1677 = vmatpush1.msra.mxu0 0.0
    %1678 = vmatprep.subr.mxu0 0.0
    %1679 = vmatpush1.msra.mxu0 0.0
    %1680 = vmatprep.subr.mxu0 0.0
    %1681 = vmatpush1.msra.mxu0 0.0
    %1682 = vmatprep.subr.mxu0 0.0
    %1683 = vmatpush1.msra.mxu0 0.0
    %1684 = vmatprep.mubr.f32.mxu0 0.0
    %1685 = vmatmul.mubr.f32.gmra.mrb[0].mxu0 %v1615
    %v1686 = vpop.f32.mrb[0].mxu0
    %v1687 = vadd.f32 0.0, %v1686
    %v1688 = vpop.f32.mrb[0].mxu0
    %1689 = vmatprep.mubr.f32.mxu0 0.0
    %1690 = vmatmul.mubr.f32.gmra.mrb[0].mxu0 %v1618
    %v1691 = vpop.f32.mrb[0].mxu0
    %v1692 = vadd.f32 0.0, %v1691
    %v1693 = vpop.f32.mrb[0].mxu0
    %1694 = vdwg.mxu0
    %v1696 = vsel %vm1444, %v1529, 0
    %v1699 = vsel %vm1444, %v1530, 0
    %1701 = vmatprep.subr.mxu0 0.0
    %1702 = vmatpush1.msra.mxu0 %v1023
    %1703 = vmatprep.subr.mxu0 0.0
    %1704 = vmatpush1.msra.mxu0 %v1091
    %1705 = vmatprep.subr.mxu0 0.0
    %1706 = vmatpush1.msra.mxu0 0.0
    %1707 = vmatprep.subr.mxu0 0.0
    %1708 = vmatpush1.msra.mxu0 0.0
    %1709 = vmatprep.subr.mxu0 0.0
    %1710 = vmatpush1.msra.mxu0 0.0
    %1711 = vmatprep.subr.mxu0 0.0
    %1712 = vmatpush1.msra.mxu0 0.0
    %1713 = vmatprep.subr.mxu0 0.0
    %1714 = vmatpush1.msra.mxu0 0.0
    %1715 = vmatprep.subr.mxu0 0.0
    %1716 = vmatpush1.msra.mxu0 0.0
    %1717 = vmatprep.subr.mxu0 0.0
    %1718 = vmatpush1.msra.mxu0 0.0
    %1719 = vmatprep.subr.mxu0 0.0
    %1720 = vmatpush1.msra.mxu0 0.0
    %1721 = vmatprep.subr.mxu0 0.0
    %1722 = vmatpush1.msra.mxu0 0.0
    %1723 = vmatprep.subr.mxu0 0.0
    %1724 = vmatpush1.msra.mxu0 0.0
    %1725 = vmatprep.subr.mxu0 0.0
    %1726 = vmatpush1.msra.mxu0 0.0
    %1727 = vmatprep.subr.mxu0 0.0
    %1728 = vmatpush1.msra.mxu0 0.0
    %1729 = vmatprep.subr.mxu0 0.0
    %1730 = vmatpush1.msra.mxu0 0.0
    %1731 = vmatprep.subr.mxu0 0.0
    %1732 = vmatpush1.msra.mxu0 0.0
    %1733 = vmatprep.subr.mxu0 0.0
    %1734 = vmatpush1.msra.mxu0 0.0
    %1735 = vmatprep.subr.mxu0 0.0
    %1736 = vmatpush1.msra.mxu0 0.0
    %1737 = vmatprep.subr.mxu0 0.0
    %1738 = vmatpush1.msra.mxu0 0.0
    %1739 = vmatprep.subr.mxu0 0.0
    %1740 = vmatpush1.msra.mxu0 0.0
    %1741 = vmatprep.subr.mxu0 0.0
    %1742 = vmatpush1.msra.mxu0 0.0
    %1743 = vmatprep.subr.mxu0 0.0
    %1744 = vmatpush1.msra.mxu0 0.0
    %1745 = vmatprep.subr.mxu0 0.0
    %1746 = vmatpush1.msra.mxu0 0.0
    %1747 = vmatprep.subr.mxu0 0.0
    %1748 = vmatpush1.msra.mxu0 0.0
    %1749 = vmatprep.subr.mxu0 0.0
    %1750 = vmatpush1.msra.mxu0 0.0
    %1751 = vmatprep.subr.mxu0 0.0
    %1752 = vmatpush1.msra.mxu0 0.0
    %1753 = vmatprep.subr.mxu0 0.0
    %1754 = vmatpush1.msra.mxu0 0.0
    %1755 = vmatprep.subr.mxu0 0.0
    %1756 = vmatpush1.msra.mxu0 0.0
    %1757 = vmatprep.subr.mxu0 0.0
    %1758 = vmatpush1.msra.mxu0 0.0
    %1759 = vmatprep.subr.mxu0 0.0
    %1760 = vmatpush1.msra.mxu0 0.0
    %1761 = vmatprep.subr.mxu0 0.0
    %1762 = vmatpush1.msra.mxu0 0.0
    %1763 = vmatprep.subr.mxu0 0.0
    %1764 = vmatpush1.msra.mxu0 0.0
    %1765 = vmatprep.mubr.f32.mxu0 0.0
    %1766 = vmatmul.mubr.f32.gmra.mrb[0].mxu0 %v1696
    %v1767 = vpop.f32.mrb[0].mxu0
    %v1768 = vadd.f32 0.0, %v1767
    %v1769 = vpop.f32.mrb[0].mxu0
    %1770 = vmatprep.mubr.f32.mxu0 0.0
    %1771 = vmatmul.mubr.f32.gmra.mrb[0].mxu0 %v1699
    %v1772 = vpop.f32.mrb[0].mxu0
    %v1773 = vadd.f32 0.0, %v1772
    %v1774 = vpop.f32.mrb[0].mxu0
    %1775 = vdwg.mxu0
    %v1777 = vsel %vm1444, %v1531, 0
    %v1780 = vsel %vm1444, %v1532, 0
    %1782 = vmatprep.subr.mxu0 0.0
    %1783 = vmatpush1.msra.mxu0 %v1024
    %1784 = vmatprep.subr.mxu0 0.0
    %1785 = vmatpush1.msra.mxu0 %v1092
    %1786 = vmatprep.subr.mxu0 0.0
    %1787 = vmatpush1.msra.mxu0 0.0
    %1788 = vmatprep.subr.mxu0 0.0
    %1789 = vmatpush1.msra.mxu0 0.0
    %1790 = vmatprep.subr.mxu0 0.0
    %1791 = vmatpush1.msra.mxu0 0.0
    %1792 = vmatprep.subr.mxu0 0.0
    %1793 = vmatpush1.msra.mxu0 0.0
    %1794 = vmatprep.subr.mxu0 0.0
    %1795 = vmatpush1.msra.mxu0 0.0
    %1796 = vmatprep.subr.mxu0 0.0
    %1797 = vmatpush1.msra.mxu0 0.0
    %1798 = vmatprep.subr.mxu0 0.0
    %1799 = vmatpush1.msra.mxu0 0.0
    %1800 = vmatprep.subr.mxu0 0.0
    %1801 = vmatpush1.msra.mxu0 0.0
    %1802 = vmatprep.subr.mxu0 0.0
    %1803 = vmatpush1.msra.mxu0 0.0
    %1804 = vmatprep.subr.mxu0 0.0
    %1805 = vmatpush1.msra.mxu0 0.0
    %1806 = vmatprep.subr.mxu0 0.0
    %1807 = vmatpush1.msra.mxu0 0.0
    %1808 = vmatprep.subr.mxu0 0.0
    %1809 = vmatpush1.msra.mxu0 0.0
    %1810 = vmatprep.subr.mxu0 0.0
    %1811 = vmatpush1.msra.mxu0 0.0
    %1812 = vmatprep.subr.mxu0 0.0
    %1813 = vmatpush1.msra.mxu0 0.0
    %1814 = vmatprep.subr.mxu0 0.0
    %1815 = vmatpush1.msra.mxu0 0.0
    %1816 = vmatprep.subr.mxu0 0.0
    %1817 = vmatpush1.msra.mxu0 0.0
    %1818 = vmatprep.subr.mxu0 0.0
    %1819 = vmatpush1.msra.mxu0 0.0
    %1820 = vmatprep.subr.mxu0 0.0
    %1821 = vmatpush1.msra.mxu0 0.0
    %1822 = vmatprep.subr.mxu0 0.0
    %1823 = vmatpush1.msra.mxu0 0.0
    %1824 = vmatprep.subr.mxu0 0.0
    %1825 = vmatpush1.msra.mxu0 0.0
    %1826 = vmatprep.subr.mxu0 0.0
    %1827 = vmatpush1.msra.mxu0 0.0
    %1828 = vmatprep.subr.mxu0 0.0
    %1829 = vmatpush1.msra.mxu0 0.0
    %1830 = vmatprep.subr.mxu0 0.0
    %1831 = vmatpush1.msra.mxu0 0.0
    %1832 = vmatprep.subr.mxu0 0.0
    %1833 = vmatpush1.msra.mxu0 0.0
    %1834 = vmatprep.subr.mxu0 0.0
    %1835 = vmatpush1.msra.mxu0 0.0
    %1836 = vmatprep.subr.mxu0 0.0
    %1837 = vmatpush1.msra.mxu0 0.0
    %1838 = vmatprep.subr.mxu0 0.0
    %1839 = vmatpush1.msra.mxu0 0.0
    %1840 = vmatprep.subr.mxu0 0.0
    %1841 = vmatpush1.msra.mxu0 0.0
    %1842 = vmatprep.subr.mxu0 0.0
    %1843 = vmatpush1.msra.mxu0 0.0
    %1844 = vmatprep.subr.mxu0 0.0
    %1845 = vmatpush1.msra.mxu0 0.0
    %1846 = vmatprep.mubr.f32.mxu0 0.0
    %1847 = vmatmul.mubr.f32.gmra.mrb[0].mxu0 %v1777
    %v1848 = vpop.f32.mrb[0].mxu0
    %v1849 = vadd.f32 0.0, %v1848
    %v1850 = vpop.f32.mrb[0].mxu0
    %1851 = vmatprep.mubr.f32.mxu0 0.0
    %1852 = vmatmul.mubr.f32.gmra.mrb[0].mxu0 %v1780
    %v1853 = vpop.f32.mrb[0].mxu0
    %v1854 = vadd.f32 0.0, %v1853
    %v1855 = vpop.f32.mrb[0].mxu0
    %1856 = vdwg.mxu0
    %v1857 = vld [vmem:[#allocation10] sm:$0xff]
    %v1858 = vld [vmem:[#allocation10 + $0x8] sm:$0xff]
    %v1859 = vld [vmem:[#allocation10 + $0x10] sm:$0xff]
    %v1860 = vld [vmem:[#allocation10 + $0x18] sm:$0xff]
    %v1862 = vsel %vm1095, %v1606, 0
    %v1865 = vsel %vm1095, %v1611, 0
    %1867 = vmatprep.subr.mxu0 0.0
    %1868 = vmatpush1.msra.mxu0 %v1857
    %1869 = vmatprep.subr.mxu0 0.0
    %1870 = vmatpush1.msra.mxu0 0.0
    %1871 = vmatprep.subr.mxu0 0.0
    %1872 = vmatpush1.msra.mxu0 0.0
    %1873 = vmatprep.subr.mxu0 0.0
    %1874 = vmatpush1.msra.mxu0 0.0
    %1875 = vmatprep.subr.mxu0 0.0
    %1876 = vmatpush1.msra.mxu0 0.0
    %1877 = vmatprep.subr.mxu0 0.0
    %1878 = vmatpush1.msra.mxu0 0.0
    %1879 = vmatprep.subr.mxu0 0.0
    %1880 = vmatpush1.msra.mxu0 0.0
    %1881 = vmatprep.subr.mxu0 0.0
    %1882 = vmatpush1.msra.mxu0 0.0
    %1883 = vmatprep.subr.mxu0 0.0
    %1884 = vmatpush1.msra.mxu0 0.0
    %1885 = vmatprep.subr.mxu0 0.0
    %1886 = vmatpush1.msra.mxu0 0.0
    %1887 = vmatprep.subr.mxu0 0.0
    %1888 = vmatpush1.msra.mxu0 0.0
    %1889 = vmatprep.subr.mxu0 0.0
    %1890 = vmatpush1.msra.mxu0 0.0
    %1891 = vmatprep.subr.mxu0 0.0
    %1892 = vmatpush1.msra.mxu0 0.0
    %1893 = vmatprep.subr.mxu0 0.0
    %1894 = vmatpush1.msra.mxu0 0.0
    %1895 = vmatprep.subr.mxu0 0.0
    %1896 = vmatpush1.msra.mxu0 0.0
    %1897 = vmatprep.subr.mxu0 0.0
    %1898 = vmatpush1.msra.mxu0 0.0
    %1899 = vmatprep.subr.mxu0 0.0
    %1900 = vmatpush1.msra.mxu0 0.0
    %1901 = vmatprep.subr.mxu0 0.0
    %1902 = vmatpush1.msra.mxu0 0.0
    %1903 = vmatprep.subr.mxu0 0.0
    %1904 = vmatpush1.msra.mxu0 0.0
    %1905 = vmatprep.subr.mxu0 0.0
    %1906 = vmatpush1.msra.mxu0 0.0
    %1907 = vmatprep.subr.mxu0 0.0
    %1908 = vmatpush1.msra.mxu0 0.0
    %1909 = vmatprep.subr.mxu0 0.0
    %1910 = vmatpush1.msra.mxu0 0.0
    %1911 = vmatprep.subr.mxu0 0.0
    %1912 = vmatpush1.msra.mxu0 0.0
    %1913 = vmatprep.subr.mxu0 0.0
    %1914 = vmatpush1.msra.mxu0 0.0
    %1915 = vmatprep.subr.mxu0 0.0
    %1916 = vmatpush1.msra.mxu0 0.0
    %1917 = vmatprep.subr.mxu0 0.0
    %1918 = vmatpush1.msra.mxu0 0.0
    %1919 = vmatprep.subr.mxu0 0.0
    %1920 = vmatpush1.msra.mxu0 0.0
    %1921 = vmatprep.subr.mxu0 0.0
    %1922 = vmatpush1.msra.mxu0 0.0
    %1923 = vmatprep.subr.mxu0 0.0
    %1924 = vmatpush1.msra.mxu0 0.0
    %1925 = vmatprep.subr.mxu0 0.0
    %1926 = vmatpush1.msra.mxu0 0.0
    %1927 = vmatprep.subr.mxu0 0.0
    %1928 = vmatpush1.msra.mxu0 0.0
    %1929 = vmatprep.subr.mxu0 0.0
    %1930 = vmatpush1.msra.mxu0 0.0
    %1931 = vmatprep.mubr.f32.mxu0 0.0
    %1932 = vmatmul.mubr.f32.gmra.mrb[0].mxu0 %v1862
    %v1933 = vpop.f32.mrb[0].mxu0
    %v1934 = vadd.f32 0.0, %v1933
    %v1935 = vpop.f32.mrb[0].mxu0
    %1936 = vmatprep.mubr.f32.mxu0 0.0
    %1937 = vmatmul.mubr.f32.gmra.mrb[0].mxu0 %v1865
    %v1938 = vpop.f32.mrb[0].mxu0
    %v1939 = vadd.f32 0.0, %v1938
    %v1940 = vpop.f32.mrb[0].mxu0
    %1941 = vdwg.mxu0
    %v1943 = vsel %vm1095, %v1687, 0
    %v1946 = vsel %vm1095, %v1692, 0
    %1948 = vmatprep.subr.mxu0 0.0
    %1949 = vmatpush1.msra.mxu0 %v1858
    %1950 = vmatprep.subr.mxu0 0.0
    %1951 = vmatpush1.msra.mxu0 0.0
    %1952 = vmatprep.subr.mxu0 0.0
    %1953 = vmatpush1.msra.mxu0 0.0
    %1954 = vmatprep.subr.mxu0 0.0
    %1955 = vmatpush1.msra.mxu0 0.0
    %1956 = vmatprep.subr.mxu0 0.0
    %1957 = vmatpush1.msra.mxu0 0.0
    %1958 = vmatprep.subr.mxu0 0.0
    %1959 = vmatpush1.msra.mxu0 0.0
    %1960 = vmatprep.subr.mxu0 0.0
    %1961 = vmatpush1.msra.mxu0 0.0
    %1962 = vmatprep.subr.mxu0 0.0
    %1963 = vmatpush1.msra.mxu0 0.0
    %1964 = vmatprep.subr.mxu0 0.0
    %1965 = vmatpush1.msra.mxu0 0.0
    %1966 = vmatprep.subr.mxu0 0.0
    %1967 = vmatpush1.msra.mxu0 0.0
    %1968 = vmatprep.subr.mxu0 0.0
    %1969 = vmatpush1.msra.mxu0 0.0
    %1970 = vmatprep.subr.mxu0 0.0
    %1971 = vmatpush1.msra.mxu0 0.0
    %1972 = vmatprep.subr.mxu0 0.0
    %1973 = vmatpush1.msra.mxu0 0.0
    %1974 = vmatprep.subr.mxu0 0.0
    %1975 = vmatpush1.msra.mxu0 0.0
    %1976 = vmatprep.subr.mxu0 0.0
    %1977 = vmatpush1.msra.mxu0 0.0
    %1978 = vmatprep.subr.mxu0 0.0
    %1979 = vmatpush1.msra.mxu0 0.0
    %1980 = vmatprep.subr.mxu0 0.0
    %1981 = vmatpush1.msra.mxu0 0.0
    %1982 = vmatprep.subr.mxu0 0.0
    %1983 = vmatpush1.msra.mxu0 0.0
    %1984 = vmatprep.subr.mxu0 0.0
    %1985 = vmatpush1.msra.mxu0 0.0
    %1986 = vmatprep.subr.mxu0 0.0
    %1987 = vmatpush1.msra.mxu0 0.0
    %1988 = vmatprep.subr.mxu0 0.0
    %1989 = vmatpush1.msra.mxu0 0.0
    %1990 = vmatprep.subr.mxu0 0.0
    %1991 = vmatpush1.msra.mxu0 0.0
    %1992 = vmatprep.subr.mxu0 0.0
    %1993 = vmatpush1.msra.mxu0 0.0
    %1994 = vmatprep.subr.mxu0 0.0
    %1995 = vmatpush1.msra.mxu0 0.0
    %1996 = vmatprep.subr.mxu0 0.0
    %1997 = vmatpush1.msra.mxu0 0.0
    %1998 = vmatprep.subr.mxu0 0.0
    %1999 = vmatpush1.msra.mxu0 0.0
    %2000 = vmatprep.subr.mxu0 0.0
    %2001 = vmatpush1.msra.mxu0 0.0
    %2002 = vmatprep.subr.mxu0 0.0
    %2003 = vmatpush1.msra.mxu0 0.0
    %2004 = vmatprep.subr.mxu0 0.0
    %2005 = vmatpush1.msra.mxu0 0.0
    %2006 = vmatprep.subr.mxu0 0.0
    %2007 = vmatpush1.msra.mxu0 0.0
    %2008 = vmatprep.subr.mxu0 0.0
    %2009 = vmatpush1.msra.mxu0 0.0
    %2010 = vmatprep.subr.mxu0 0.0
    %2011 = vmatpush1.msra.mxu0 0.0
    %2012 = vmatprep.mubr.f32.mxu0 0.0
    %2013 = vmatmul.mubr.f32.gmra.mrb[0].mxu0 %v1943
    %v2014 = vpop.f32.mrb[0].mxu0
    %v2015 = vadd.f32 0.0, %v2014
    %v2016 = vpop.f32.mrb[0].mxu0
    %2017 = vmatprep.mubr.f32.mxu0 0.0
    %2018 = vmatmul.mubr.f32.gmra.mrb[0].mxu0 %v1946
    %v2019 = vpop.f32.mrb[0].mxu0
    %v2020 = vadd.f32 0.0, %v2019
    %v2021 = vpop.f32.mrb[0].mxu0
    %2022 = vdwg.mxu0
    %v2024 = vsel %vm1095, %v1768, 0
    %v2027 = vsel %vm1095, %v1773, 0
    %2029 = vmatprep.subr.mxu0 0.0
    %2030 = vmatpush1.msra.mxu0 %v1859
    %2031 = vmatprep.subr.mxu0 0.0
    %2032 = vmatpush1.msra.mxu0 0.0
    %2033 = vmatprep.subr.mxu0 0.0
    %2034 = vmatpush1.msra.mxu0 0.0
    %2035 = vmatprep.subr.mxu0 0.0
    %2036 = vmatpush1.msra.mxu0 0.0
    %2037 = vmatprep.subr.mxu0 0.0
    %2038 = vmatpush1.msra.mxu0 0.0
    %2039 = vmatprep.subr.mxu0 0.0
    %2040 = vmatpush1.msra.mxu0 0.0
    %2041 = vmatprep.subr.mxu0 0.0
    %2042 = vmatpush1.msra.mxu0 0.0
    %2043 = vmatprep.subr.mxu0 0.0
    %2044 = vmatpush1.msra.mxu0 0.0
    %2045 = vmatprep.subr.mxu0 0.0
    %2046 = vmatpush1.msra.mxu0 0.0
    %2047 = vmatprep.subr.mxu0 0.0
    %2048 = vmatpush1.msra.mxu0 0.0
    %2049 = vmatprep.subr.mxu0 0.0
    %2050 = vmatpush1.msra.mxu0 0.0
    %2051 = vmatprep.subr.mxu0 0.0
    %2052 = vmatpush1.msra.mxu0 0.0
    %2053 = vmatprep.subr.mxu0 0.0
    %2054 = vmatpush1.msra.mxu0 0.0
    %2055 = vmatprep.subr.mxu0 0.0
    %2056 = vmatpush1.msra.mxu0 0.0
    %2057 = vmatprep.subr.mxu0 0.0
    %2058 = vmatpush1.msra.mxu0 0.0
    %2059 = vmatprep.subr.mxu0 0.0
    %2060 = vmatpush1.msra.mxu0 0.0
    %2061 = vmatprep.subr.mxu0 0.0
    %2062 = vmatpush1.msra.mxu0 0.0
    %2063 = vmatprep.subr.mxu0 0.0
    %2064 = vmatpush1.msra.mxu0 0.0
    %2065 = vmatprep.subr.mxu0 0.0
    %2066 = vmatpush1.msra.mxu0 0.0
    %2067 = vmatprep.subr.mxu0 0.0
    %2068 = vmatpush1.msra.mxu0 0.0
    %2069 = vmatprep.subr.mxu0 0.0
    %2070 = vmatpush1.msra.mxu0 0.0
    %2071 = vmatprep.subr.mxu0 0.0
    %2072 = vmatpush1.msra.mxu0 0.0
    %2073 = vmatprep.subr.mxu0 0.0
    %2074 = vmatpush1.msra.mxu0 0.0
    %2075 = vmatprep.subr.mxu0 0.0
    %2076 = vmatpush1.msra.mxu0 0.0
    %2077 = vmatprep.subr.mxu0 0.0
    %2078 = vmatpush1.msra.mxu0 0.0
    %2079 = vmatprep.subr.mxu0 0.0
    %2080 = vmatpush1.msra.mxu0 0.0
    %2081 = vmatprep.subr.mxu0 0.0
    %2082 = vmatpush1.msra.mxu0 0.0
    %2083 = vmatprep.subr.mxu0 0.0
    %2084 = vmatpush1.msra.mxu0 0.0
    %2085 = vmatprep.subr.mxu0 0.0
    %2086 = vmatpush1.msra.mxu0 0.0
    %2087 = vmatprep.subr.mxu0 0.0
    %2088 = vmatpush1.msra.mxu0 0.0
    %2089 = vmatprep.subr.mxu0 0.0
    %2090 = vmatpush1.msra.mxu0 0.0
    %2091 = vmatprep.subr.mxu0 0.0
    %2092 = vmatpush1.msra.mxu0 0.0
    %2093 = vmatprep.mubr.f32.mxu0 0.0
    %2094 = vmatmul.mubr.f32.gmra.mrb[0].mxu0 %v2024
    %v2095 = vpop.f32.mrb[0].mxu0
    %v2096 = vadd.f32 0.0, %v2095
    %v2097 = vpop.f32.mrb[0].mxu0
    %2098 = vmatprep.mubr.f32.mxu0 0.0
    %2099 = vmatmul.mubr.f32.gmra.mrb[0].mxu0 %v2027
    %v2100 = vpop.f32.mrb[0].mxu0
    %v2101 = vadd.f32 0.0, %v2100
    %v2102 = vpop.f32.mrb[0].mxu0
    %2103 = vdwg.mxu0
    %v2105 = vsel %vm1095, %v1849, 0
    %v2108 = vsel %vm1095, %v1854, 0
    %2110 = vmatprep.subr.mxu0 0.0
    %2111 = vmatpush1.msra.mxu0 %v1860
    %2112 = vmatprep.subr.mxu0 0.0
    %2113 = vmatpush1.msra.mxu0 0.0
    %2114 = vmatprep.subr.mxu0 0.0
    %2115 = vmatpush1.msra.mxu0 0.0
    %2116 = vmatprep.subr.mxu0 0.0
    %2117 = vmatpush1.msra.mxu0 0.0
    %2118 = vmatprep.subr.mxu0 0.0
    %2119 = vmatpush1.msra.mxu0 0.0
    %2120 = vmatprep.subr.mxu0 0.0
    %2121 = vmatpush1.msra.mxu0 0.0
    %2122 = vmatprep.subr.mxu0 0.0
    %2123 = vmatpush1.msra.mxu0 0.0
    %2124 = vmatprep.subr.mxu0 0.0
    %2125 = vmatpush1.msra.mxu0 0.0
    %2126 = vmatprep.subr.mxu0 0.0
    %2127 = vmatpush1.msra.mxu0 0.0
    %2128 = vmatprep.subr.mxu0 0.0
    %2129 = vmatpush1.msra.mxu0 0.0
    %2130 = vmatprep.subr.mxu0 0.0
    %2131 = vmatpush1.msra.mxu0 0.0
    %2132 = vmatprep.subr.mxu0 0.0
    %2133 = vmatpush1.msra.mxu0 0.0
    %2134 = vmatprep.subr.mxu0 0.0
    %2135 = vmatpush1.msra.mxu0 0.0
    %2136 = vmatprep.subr.mxu0 0.0
    %2137 = vmatpush1.msra.mxu0 0.0
    %2138 = vmatprep.subr.mxu0 0.0
    %2139 = vmatpush1.msra.mxu0 0.0
    %2140 = vmatprep.subr.mxu0 0.0
    %2141 = vmatpush1.msra.mxu0 0.0
    %2142 = vmatprep.subr.mxu0 0.0
    %2143 = vmatpush1.msra.mxu0 0.0
    %2144 = vmatprep.subr.mxu0 0.0
    %2145 = vmatpush1.msra.mxu0 0.0
    %2146 = vmatprep.subr.mxu0 0.0
    %2147 = vmatpush1.msra.mxu0 0.0
    %2148 = vmatprep.subr.mxu0 0.0
    %2149 = vmatpush1.msra.mxu0 0.0
    %2150 = vmatprep.subr.mxu0 0.0
    %2151 = vmatpush1.msra.mxu0 0.0
    %2152 = vmatprep.subr.mxu0 0.0
    %2153 = vmatpush1.msra.mxu0 0.0
    %2154 = vmatprep.subr.mxu0 0.0
    %2155 = vmatpush1.msra.mxu0 0.0
    %2156 = vmatprep.subr.mxu0 0.0
    %2157 = vmatpush1.msra.mxu0 0.0
    %2158 = vmatprep.subr.mxu0 0.0
    %2159 = vmatpush1.msra.mxu0 0.0
    %2160 = vmatprep.subr.mxu0 0.0
    %2161 = vmatpush1.msra.mxu0 0.0
    %2162 = vmatprep.subr.mxu0 0.0
    %2163 = vmatpush1.msra.mxu0 0.0
    %2164 = vmatprep.subr.mxu0 0.0
    %2165 = vmatpush1.msra.mxu0 0.0
    %2166 = vmatprep.subr.mxu0 0.0
    %2167 = vmatpush1.msra.mxu0 0.0
    %2168 = vmatprep.subr.mxu0 0.0
    %2169 = vmatpush1.msra.mxu0 0.0
    %2170 = vmatprep.subr.mxu0 0.0
    %2171 = vmatpush1.msra.mxu0 0.0
    %2172 = vmatprep.subr.mxu0 0.0
    %2173 = vmatpush1.msra.mxu0 0.0
    %2174 = vmatprep.mubr.f32.mxu0 0.0
    %2175 = vmatmul.mubr.f32.gmra.mrb[0].mxu0 %v2105
    %v2176 = vpop.f32.mrb[0].mxu0
    %v2177 = vadd.f32 0.0, %v2176
    %v2178 = vpop.f32.mrb[0].mxu0
    %2179 = vmatprep.mubr.f32.mxu0 0.0
    %2180 = vmatmul.mubr.f32.gmra.mrb[0].mxu0 %v2108
    %v2181 = vpop.f32.mrb[0].mxu0
    %v2182 = vadd.f32 0.0, %v2181
    %v2183 = vpop.f32.mrb[0].mxu0
    %2184 = vdwg.mxu0
    %v2185 = vsel %vm102, %v1934, 0.0
    %v2186 = vsel %vm102, %v2015, 0.0
    %v2187 = vadd.f32 %v2185, %v2186
    %v2188 = vsel %vm102, %v2096, 0.0
    %v2189 = vadd.f32 %v2187, %v2188
    %v2190 = vsel %vm102, %v2177, 0.0
    %v2191 = vadd.f32 %v2189, %v2190
    %v2192 = vsel %vm102, %v1939, 0.0
    %v2193 = vsel %vm102, %v2020, 0.0
    %v2194 = vadd.f32 %v2192, %v2193
    %v2195 = vsel %vm102, %v2101, 0.0
    %v2196 = vadd.f32 %v2194, %v2195
    %v2197 = vsel %vm102, %v2182, 0.0
    %v2198 = vadd.f32 %v2196, %v2197
    %v2199 = vld [vmem:[%s5] sm:$0x1]
    %v2201 = vlaneseq
    %v2202 = vshrl.u32 %v2201, 7
    %v2203 = vsub.s32 0, %v2202
    %v2204 = vrot.slane %v2199, %v2203
    %v2206 = vadd.f32 %v2191, %v2204
    %v2207 = vadd.f32 %v2198, %v2204
    %2208 = vst.msk [vmem:[#allocation11] sm:$0xff] %vm102, %v2206
    %2209 = vst.msk [vmem:[#allocation11 + $0x8] sm:$0xff] %vm102, %v2207
    // Predicated region
    $region46: #{tpu_custom_call.1} parent=1 // pred_check
      _
    $region47: #{tpu_custom_call.1} parent=1 // pred_check_branch
      %2211 = sbr.rel (0) target = $region49
    $region48: #{tpu_custom_call.1} parent=1 // pred_region
      %s2213 = ssub.s32 256, 256
      %2214 = vsyncadd [#allocation4], %s2213
      %s2215 = sshll.u32 [#allocation11], 4
      %s2216 = int_to_ptr.vmem [resolvable:$true] %s2215
      %2221 = dma.vmem_to_hbm [thread:$0]  %s2216, 256, %s6, [#allocation4], 128, 128, 8
    $region49: #{tpu_custom_call.1} parent=1 // pred_fallthru
      _
    // Predicated region
    $region50: #{tpu_custom_call.1} parent=1 // pred_check
      _
    $region51: #{tpu_custom_call.1} parent=1 // pred_check_branch
      %2223 = sbr.rel (0) target = $region53
    $region52: #{tpu_custom_call.1} parent=1 // pred_region
      %2224 = dma.done [#allocation4], 256
    $region53: #{tpu_custom_call.1} parent=1 // pred_fallthru
      _
    %2225 = vsyncpa [#allocation3], 1
    %2226 = vsyncpa [#allocation6], 1
    %2227 = vsyncpa [#allocation9], 1
    %2228 = vsyncpa [#allocation4], 1

</llo_original>
